<compile_context>
chip_gen: v7x
topology: tpu7x:2x2x1
jax: 0.10.0
libtpu: 0.0.40
codegen_flags: <defaults>
</compile_context>

<pallas_src>
import functools

import numpy as np
import jax
import jax.numpy as jnp
from jax.experimental import pallas as pl
from jax.experimental.pallas import tpu as pltpu


def _mgn_gru_d_kernel(iobs_ref, ct_ref, x_ref, m_ref,
                      h_in, lx_in, lt_in,
                      wgx_ref, wgh_ref,
                      wzrx_ref, wzrh_ref, wzrm_ref, bzr_ref,
                      whx_ref, whm_ref, whh_ref, bh_ref,
                      h_out, lx_out, lt_out,
                      g_h, g_lx, g_lt,
                      *, n_obs, input_size, hidden_size):
    D, H = input_size, hidden_size

    # ---- 0. Pass-through copy: rows not in i_obs keep their old values.
    h_out[...] = h_in[...]
    lx_out[...] = lx_in[...]
    lt_out[...] = lt_in[...]

    # ---- 1. Gather observed rows with plain VMEM indexing (no per-row DMA).
    #         n_obs is small; unrolled loop is fine (switch to lax.fori_loop
    #         over an SMEM index table if n_obs grows beyond ~16).
    idxs = [iobs_ref[i] for i in range(n_obs)]
    for i in range(n_obs):
        g_h[pl.ds(i, 1), :] = h_in[pl.ds(idxs[i], 1), :]
        g_lx[pl.ds(i, 1), :] = lx_in[pl.ds(idxs[i], 1), :]
        g_lt[pl.ds(i, 1), :] = lt_in[pl.ds(idxs[i], 1), :]

    # ---- 2. Compute: f32 elementwise/gating math; bf16 MXU operands with f32
    #         accumulate. Dots are independent pushes (no LHS lane-concat).
    t = ct_ref[0]                          # current_time (scalar, SMEM)
    x = x_ref[...]                         # (n_obs, D)  observed values
    m = m_ref[...]                         # (n_obs, D)  observation mask
    lx = g_lx[...]                         # (n_obs, D)  last_x[i_obs]
    lt = g_lt[...]                         # (n_obs, D)  last_t[i_obs]
    h = g_h[...]                           # (n_obs, H)  mgn_h[i_obs]
    one = jnp.float32(1.0)
    one_m = one - m

    def bdot(a, w_ref):
        return jnp.dot(a.astype(jnp.bfloat16), w_ref[...],
                       preferred_element_type=jnp.float32)

    # last_x[i_obs] = last_x[i_obs]*(1-M) + X*M
    lx_new = lx * one_m + x * m

    # mean_x = sum(X_obs, 0) / sum(M_obs + 1e-6, 0)   (exact divide; tiny)
    mean_x = jnp.sum(x, axis=0, keepdims=True) / jnp.sum(
        m + 1e-6, axis=0, keepdims=True)

    # interval uses the OLD last_t; then last_t is updated.
    interval = t - lt
    lt_new = lt * one_m + t * m

    # gamma_x / gamma_h: exp(-relu(interval @ Wg*)), separate dots.
    gamma_x = jnp.exp(-jnp.maximum(0.0, bdot(interval, wgx_ref)))
    gamma_h = jnp.exp(-jnp.maximum(0.0, bdot(interval, wgh_ref)))

    # X_hat = M*X + (1-M)*gamma_x*last_x_new + (1-M)*(1-gamma_x)*mean_x
    x_hat = m * x + one_m * (gamma_x * lx_new + (one - gamma_x) * mean_x)

    # ----- GRU-D cell (standard formulation) -----
    hd = gamma_h * h                                   # decayed hidden state
    zr = jax.nn.sigmoid(bdot(x_hat, wzrx_ref) + bdot(hd, wzrh_ref)
                        + bdot(m, wzrm_ref) + bzr_ref[...])   # (n_obs, 2H)
    z = zr[:, :H]
    r = zr[:, H:]
    h_tilde = jnp.tanh(bdot(x_hat, whx_ref) + bdot(m, whm_ref)
                       + bdot(r * hd, whh_ref) + bh_ref[...])
    h_new = (one - z) * hd + z * h_tilde

    # ---- 3. Scatter the updated rows back (plain VMEM indexing).
    g_h[...] = h_new
    g_lx[...] = lx_new
    g_lt[...] = lt_new
    for i in range(n_obs):
        h_out[pl.ds(idxs[i], 1), :] = g_h[pl.ds(i, 1), :]
        lx_out[pl.ds(idxs[i], 1), :] = g_lx[pl.ds(i, 1), :]
        lt_out[pl.ds(idxs[i], 1), :] = g_lt[pl.ds(i, 1), :]


@functools.partial(jax.jit, donate_argnums=(2, 6, 7))
def mgn_gru_d_forward(params, current_time, mgn_h, X_obs, M_obs, i_obs,
                      last_x, last_t):
    """Single Pallas call: VMEM-resident state, in-kernel gather/scatter by
    VMEM indexing, fused GRU-D math, true in-place (donated + aliased) update."""
    n_obs, D = X_obs.shape
    N, H = mgn_h.shape
    ct = jnp.asarray(current_time, jnp.float32).reshape(1)
    i_obs = i_obs.astype(jnp.int32)

    vmem = pl.BlockSpec(memory_space=pltpu.MemorySpace.VMEM)
    smem = pl.BlockSpec(memory_space=pltpu.MemorySpace.SMEM)

    kernel = functools.partial(_mgn_gru_d_kernel, n_obs=n_obs,
                               input_size=D, hidden_size=H)

    h_new, lx_new, lt_new = pl.pallas_call(
        kernel,
        out_shape=(jax.ShapeDtypeStruct((N, H), jnp.float32),
                   jax.ShapeDtypeStruct((N, D), jnp.float32),
                   jax.ShapeDtypeStruct((N, D), jnp.float32)),
        in_specs=[smem, smem, vmem, vmem,        # i_obs, ct, X_obs, M_obs
                  vmem, vmem, vmem]              # mgn_h, last_x, last_t
                 + [vmem] * 10,                  # weights / biases
        out_specs=(vmem, vmem, vmem),
        scratch_shapes=[pltpu.VMEM((n_obs, H), jnp.float32),
                        pltpu.VMEM((n_obs, D), jnp.float32),
                        pltpu.VMEM((n_obs, D), jnp.float32)],
        # In-place state update: mgn_h -> out0, last_x -> out1, last_t -> out2.
        input_output_aliases={4: 0, 5: 1, 6: 2},
    )(i_obs, ct, X_obs, M_obs, mgn_h, last_x, last_t,
      params['w_gx'], params['w_gh'],
      params['w_zr_x'], params['w_zr_h'], params['w_zr_m'], params['b_zr'],
      params['w_h_x'], params['w_h_m'], params['w_hh'], params['b_h'])

    return h_new, lx_new, lt_new


def init_params(key, input_size, n_dim):
    """Deterministic synthetic weights in [in, out] layout (x @ W), fused once
    per LHS-group into the slabs the kernel consumes (bf16 MXU operands,
    f32 biases). No zero hd->candidate block."""
    D = input_size
    H = D * n_dim
    names = ['wgx', 'wgh', 'wxz', 'wxr', 'wxh', 'whz', 'whr', 'whh',
             'wmz', 'wmr', 'wmh', 'bz', 'br', 'bh']
    shapes = {
        'wgx': ((D, D), D), 'wgh': ((D, H), D),
        'wxz': ((D, H), D), 'wxr': ((D, H), D), 'wxh': ((D, H), D),
        'whz': ((H, H), H), 'whr': ((H, H), H), 'whh': ((H, H), H),
        'wmz': ((D, H), D), 'wmr': ((D, H), D), 'wmh': ((D, H), D),
        'bz': ((1, H), D), 'br': ((1, H), D), 'bh': ((1, H), D),
    }
    ks = jax.random.split(key, len(names))
    raw = {}
    for name, k in zip(names, ks):
        shp, fan_in = shapes[name]
        bound = 1.0 / (fan_in ** 0.5)
        raw[name] = jax.random.uniform(k, shp, jnp.float32, -bound, bound)

    bf16 = jnp.bfloat16
    return {
        'w_gx': raw['wgx'].astype(bf16),                              # (D, D)
        'w_gh': raw['wgh'].astype(bf16),                              # (D, H)
        # z/r gates grouped per LHS: [Wz | Wr]
        'w_zr_x': jnp.concatenate([raw['wxz'], raw['wxr']], 1).astype(bf16),
        'w_zr_h': jnp.concatenate([raw['whz'], raw['whr']], 1).astype(bf16),
        'w_zr_m': jnp.concatenate([raw['wmz'], raw['wmr']], 1).astype(bf16),
        'b_zr': jnp.concatenate([raw['bz'], raw['br']], 1),           # f32
        # candidate
        'w_h_x': raw['wxh'].astype(bf16),
        'w_h_m': raw['wmh'].astype(bf16),
        'w_hh': raw['whh'].astype(bf16),
        'b_h': raw['bh'],                                             # f32
    }


def _reference_forward(params, current_time, mgn_h, X_obs, M_obs, i_obs,
                       last_x, last_t):
    """Pure-JAX mirror of the kernel math (same bf16/f32 mixed precision)."""
    H = mgn_h.shape[1]
    x, m = X_obs, M_obs
    one_m = 1.0 - m

    def bdot(a, w):
        return jnp.dot(a.astype(jnp.bfloat16), w,
                       preferred_element_type=jnp.float32)

    lx_rows = last_x[i_obs] * one_m + x * m
    last_x = last_x.at[i_obs].set(lx_rows)
    mean_x = jnp.sum(x, 0, keepdims=True) / jnp.sum(m + 1e-6, 0, keepdims=True)
    interval = current_time - last_t[i_obs]
    lt_rows = last_t[i_obs] * one_m + current_time * m
    last_t = last_t.at[i_obs].set(lt_rows)
    gamma_x = jnp.exp(-jnp.maximum(0.0, bdot(interval, params['w_gx'])))
    gamma_h = jnp.exp(-jnp.maximum(0.0, bdot(interval, params['w_gh'])))
    x_hat = m * x + one_m * (gamma_x * lx_rows + (1.0 - gamma_x) * mean_x)
    hd = gamma_h * mgn_h[i_obs]
    zr = jax.nn.sigmoid(bdot(x_hat, params['w_zr_x']) + bdot(hd, params['w_zr_h'])
                        + bdot(m, params['w_zr_m']) + params['b_zr'])
    z, r = zr[:, :H], zr[:, H:]
    h_tilde = jnp.tanh(bdot(x_hat, params['w_h_x']) + bdot(m, params['w_h_m'])
                       + bdot(r * hd, params['w_hh']) + params['b_h'])
    h_rows = (1.0 - z) * hd + z * h_tilde
    mgn_h = mgn_h.at[i_obs].set(h_rows)
    return mgn_h, last_x, last_t


if __name__ == "__main__":
    key = jax.random.PRNGKey(0)
    kp, kh, kx, km, klx, klt = jax.random.split(key, 6)

    # Sizes implied by the module: input_dim D, memory_dim n_dim, hidden = D*n_dim.
    N, n_obs, D, n_dim = 16, 8, 8, 4
    H = D * n_dim

    params = init_params(kp, D, n_dim)

    mgn_h = jax.random.normal(kh, (N, H), jnp.float32)
    X_obs = jax.random.normal(kx, (n_obs, D), jnp.float32)
    M_obs = jax.random.bernoulli(km, 0.5, (n_obs, D)).astype(jnp.float32)
    i_obs = jnp.array([0, 2, 3, 5, 7, 9, 12, 15], dtype=jnp.int32)
    last_x = jax.random.normal(klx, (N, D), jnp.float32)
    last_t = jax.random.uniform(klt, (N, D), jnp.float32, 0.0, 0.5)
    current_time = 1.0

    # Host snapshots + pure-JAX reference BEFORE the call (state is donated).
    h_before = np.asarray(jax.device_get(mgn_h))
    lx_before = np.asarray(jax.device_get(last_x))
    lt_before = np.asarray(jax.device_get(last_t))
    ref_h, ref_lx, ref_lt = jax.block_until_ready(_reference_forward(
        params, current_time, mgn_h, X_obs, M_obs, i_obs, last_x, last_t))

    mgn_h_new, last_x_new, last_t_new = jax.block_until_ready(
        mgn_gru_d_forward(params, current_time, mgn_h, X_obs, M_obs, i_obs,
                          last_x, last_t))

    assert mgn_h_new.shape == (N, H)
    assert last_x_new.shape == (N, D)
    assert last_t_new.shape == (N, D)

    # Rows not in i_obs must be bit-identical (pass-through copy).
    unobserved = np.setdiff1d(np.arange(N), np.asarray(i_obs))
    assert np.array_equal(np.asarray(mgn_h_new)[unobserved], h_before[unobserved])
    assert np.array_equal(np.asarray(last_x_new)[unobserved], lx_before[unobserved])
    assert np.array_equal(np.asarray(last_t_new)[unobserved], lt_before[unobserved])

    # All rows match the pure-JAX reference (same mixed precision).
    assert np.allclose(np.asarray(mgn_h_new), np.asarray(ref_h),
                       atol=1e-2, rtol=1e-2)
    assert np.allclose(np.asarray(last_x_new), np.asarray(ref_lx),
                       atol=1e-5, rtol=1e-5)
    assert np.allclose(np.asarray(last_t_new), np.asarray(ref_lt),
                       atol=1e-5, rtol=1e-5)

    print("KERNEL_OK")
</pallas_src>

<mosaic_0001>
module attributes {stable_mosaic.version = 11 : i64} {
  func.func @_mgn_gru_d_kernel(%arg0: memref<8xi32, #tpu.memory_space<smem>>, %arg1: memref<1xf32, #tpu.memory_space<smem>>, %arg2: memref<8x8xf32, #tpu.memory_space<vmem>>, %arg3: memref<8x8xf32, #tpu.memory_space<vmem>>, %arg4: memref<16x32xf32, #tpu.memory_space<vmem>>, %arg5: memref<16x8xf32, #tpu.memory_space<vmem>>, %arg6: memref<16x8xf32, #tpu.memory_space<vmem>>, %arg7: memref<8x8xbf16, #tpu.memory_space<vmem>>, %arg8: memref<8x32xbf16, #tpu.memory_space<vmem>>, %arg9: memref<8x64xbf16, #tpu.memory_space<vmem>>, %arg10: memref<32x64xbf16, #tpu.memory_space<vmem>>, %arg11: memref<8x64xbf16, #tpu.memory_space<vmem>>, %arg12: memref<1x64xf32, #tpu.memory_space<vmem>>, %arg13: memref<8x32xbf16, #tpu.memory_space<vmem>>, %arg14: memref<8x32xbf16, #tpu.memory_space<vmem>>, %arg15: memref<32x32xbf16, #tpu.memory_space<vmem>>, %arg16: memref<1x32xf32, #tpu.memory_space<vmem>>, %arg17: memref<16x32xf32, #tpu.memory_space<vmem>>, %arg18: memref<16x8xf32, #tpu.memory_space<vmem>>, %arg19: memref<16x8xf32, #tpu.memory_space<vmem>>, %arg20: memref<8x32xf32, #tpu.memory_space<vmem>>, %arg21: memref<8x8xf32, #tpu.memory_space<vmem>>, %arg22: memref<8x8xf32, #tpu.memory_space<vmem>>) attributes {dimension_semantics = [], scalar_prefetch = 0 : i64, scratch_operands = 3 : i64, tpu.core_type = #tpu.core_type<tc>} {
    %c0 = arith.constant 0 : index
    %c0_0 = arith.constant 0 : index
    %0 = vector.load %arg4[%c0, %c0_0] : memref<16x32xf32, #tpu.memory_space<vmem>>, vector<16x32xf32>
    %c0_1 = arith.constant 0 : index
    %c0_2 = arith.constant 0 : index
    %1 = vector.load %arg17[%c0_1, %c0_2] : memref<16x32xf32, #tpu.memory_space<vmem>>, vector<16x32xf32>
    tpu.vector_store %arg17[%c0_1, %c0_2], %0 {strides = array<i32>} : memref<16x32xf32, #tpu.memory_space<vmem>>, vector<16x32xf32>,
    %c0_3 = arith.constant 0 : index
    %c0_4 = arith.constant 0 : index
    %2 = vector.load %arg5[%c0_3, %c0_4] : memref<16x8xf32, #tpu.memory_space<vmem>>, vector<16x8xf32>
    %c0_5 = arith.constant 0 : index
    %c0_6 = arith.constant 0 : index
    %3 = vector.load %arg18[%c0_5, %c0_6] : memref<16x8xf32, #tpu.memory_space<vmem>>, vector<16x8xf32>
    tpu.vector_store %arg18[%c0_5, %c0_6], %2 {strides = array<i32>} : memref<16x8xf32, #tpu.memory_space<vmem>>, vector<16x8xf32>,
    %c0_7 = arith.constant 0 : index
    %c0_8 = arith.constant 0 : index
    %4 = vector.load %arg6[%c0_7, %c0_8] : memref<16x8xf32, #tpu.memory_space<vmem>>, vector<16x8xf32>
    %c0_9 = arith.constant 0 : index
    %c0_10 = arith.constant 0 : index
    %5 = vector.load %arg19[%c0_9, %c0_10] : memref<16x8xf32, #tpu.memory_space<vmem>>, vector<16x8xf32>
    tpu.vector_store %arg19[%c0_9, %c0_10], %4 {strides = array<i32>} : memref<16x8xf32, #tpu.memory_space<vmem>>, vector<16x8xf32>,
    %c0_11 = arith.constant 0 : index
    %6 = memref.load %arg0[%c0_11] : memref<8xi32, #tpu.memory_space<smem>>
    %c1 = arith.constant 1 : index
    %7 = memref.load %arg0[%c1] : memref<8xi32, #tpu.memory_space<smem>>
    %c2 = arith.constant 2 : index
    %8 = memref.load %arg0[%c2] : memref<8xi32, #tpu.memory_space<smem>>
    %c3 = arith.constant 3 : index
    %9 = memref.load %arg0[%c3] : memref<8xi32, #tpu.memory_space<smem>>
    %c4 = arith.constant 4 : index
    %10 = memref.load %arg0[%c4] : memref<8xi32, #tpu.memory_space<smem>>
    %c5 = arith.constant 5 : index
    %11 = memref.load %arg0[%c5] : memref<8xi32, #tpu.memory_space<smem>>
    %c6 = arith.constant 6 : index
    %12 = memref.load %arg0[%c6] : memref<8xi32, #tpu.memory_space<smem>>
    %c7 = arith.constant 7 : index
    %13 = memref.load %arg0[%c7] : memref<8xi32, #tpu.memory_space<smem>>
    %14 = arith.index_cast %6 : i32 to index
    %c0_12 = arith.constant 0 : index
    %15 = vector.load %arg4[%14, %c0_12] : memref<16x32xf32, #tpu.memory_space<vmem>>, vector<1x32xf32>
    %c0_13 = arith.constant 0 : index
    %c0_14 = arith.constant 0 : index
    %16 = vector.load %arg20[%c0_13, %c0_14] : memref<8x32xf32, #tpu.memory_space<vmem>>, vector<1x32xf32>
    tpu.vector_store %arg20[%c0_13, %c0_14], %15 {strides = array<i32>} : memref<8x32xf32, #tpu.memory_space<vmem>>, vector<1x32xf32>,
    %17 = arith.index_cast %6 : i32 to index
    %c0_15 = arith.constant 0 : index
    %18 = vector.load %arg5[%17, %c0_15] : memref<16x8xf32, #tpu.memory_space<vmem>>, vector<1x8xf32>
    %c0_16 = arith.constant 0 : index
    %c0_17 = arith.constant 0 : index
    %19 = vector.load %arg21[%c0_16, %c0_17] : memref<8x8xf32, #tpu.memory_space<vmem>>, vector<1x8xf32>
    tpu.vector_store %arg21[%c0_16, %c0_17], %18 {strides = array<i32>} : memref<8x8xf32, #tpu.memory_space<vmem>>, vector<1x8xf32>,
    %20 = arith.index_cast %6 : i32 to index
    %c0_18 = arith.constant 0 : index
    %21 = vector.load %arg6[%20, %c0_18] : memref<16x8xf32, #tpu.memory_space<vmem>>, vector<1x8xf32>
    %c0_19 = arith.constant 0 : index
    %c0_20 = arith.constant 0 : index
    %22 = vector.load %arg22[%c0_19, %c0_20] : memref<8x8xf32, #tpu.memory_space<vmem>>, vector<1x8xf32>
    tpu.vector_store %arg22[%c0_19, %c0_20], %21 {strides = array<i32>} : memref<8x8xf32, #tpu.memory_space<vmem>>, vector<1x8xf32>,
    %23 = arith.index_cast %7 : i32 to index
    %c0_21 = arith.constant 0 : index
    %24 = vector.load %arg4[%23, %c0_21] : memref<16x32xf32, #tpu.memory_space<vmem>>, vector<1x32xf32>
    %c1_22 = arith.constant 1 : index
    %c0_23 = arith.constant 0 : index
    %25 = vector.load %arg20[%c1_22, %c0_23] : memref<8x32xf32, #tpu.memory_space<vmem>>, vector<1x32xf32>
    tpu.vector_store %arg20[%c1_22, %c0_23], %24 {strides = array<i32>} : memref<8x32xf32, #tpu.memory_space<vmem>>, vector<1x32xf32>,
    %26 = arith.index_cast %7 : i32 to index
    %c0_24 = arith.constant 0 : index
    %27 = vector.load %arg5[%26, %c0_24] : memref<16x8xf32, #tpu.memory_space<vmem>>, vector<1x8xf32>
    %c1_25 = arith.constant 1 : index
    %c0_26 = arith.constant 0 : index
    %28 = vector.load %arg21[%c1_25, %c0_26] : memref<8x8xf32, #tpu.memory_space<vmem>>, vector<1x8xf32>
    tpu.vector_store %arg21[%c1_25, %c0_26], %27 {strides = array<i32>} : memref<8x8xf32, #tpu.memory_space<vmem>>, vector<1x8xf32>,
    %29 = arith.index_cast %7 : i32 to index
    %c0_27 = arith.constant 0 : index
    %30 = vector.load %arg6[%29, %c0_27] : memref<16x8xf32, #tpu.memory_space<vmem>>, vector<1x8xf32>
    %c1_28 = arith.constant 1 : index
    %c0_29 = arith.constant 0 : index
    %31 = vector.load %arg22[%c1_28, %c0_29] : memref<8x8xf32, #tpu.memory_space<vmem>>, vector<1x8xf32>
    tpu.vector_store %arg22[%c1_28, %c0_29], %30 {strides = array<i32>} : memref<8x8xf32, #tpu.memory_space<vmem>>, vector<1x8xf32>,
    %32 = arith.index_cast %8 : i32 to index
    %c0_30 = arith.constant 0 : index
    %33 = vector.load %arg4[%32, %c0_30] : memref<16x32xf32, #tpu.memory_space<vmem>>, vector<1x32xf32>
    %c2_31 = arith.constant 2 : index
    %c0_32 = arith.constant 0 : index
    %34 = vector.load %arg20[%c2_31, %c0_32] : memref<8x32xf32, #tpu.memory_space<vmem>>, vector<1x32xf32>
    tpu.vector_store %arg20[%c2_31, %c0_32], %33 {strides = array<i32>} : memref<8x32xf32, #tpu.memory_space<vmem>>, vector<1x32xf32>,
    %35 = arith.index_cast %8 : i32 to index
    %c0_33 = arith.constant 0 : index
    %36 = vector.load %arg5[%35, %c0_33] : memref<16x8xf32, #tpu.memory_space<vmem>>, vector<1x8xf32>
    %c2_34 = arith.constant 2 : index
    %c0_35 = arith.constant 0 : index
    %37 = vector.load %arg21[%c2_34, %c0_35] : memref<8x8xf32, #tpu.memory_space<vmem>>, vector<1x8xf32>
    tpu.vector_store %arg21[%c2_34, %c0_35], %36 {strides = array<i32>} : memref<8x8xf32, #tpu.memory_space<vmem>>, vector<1x8xf32>,
    %38 = arith.index_cast %8 : i32 to index
    %c0_36 = arith.constant 0 : index
    %39 = vector.load %arg6[%38, %c0_36] : memref<16x8xf32, #tpu.memory_space<vmem>>, vector<1x8xf32>
    %c2_37 = arith.constant 2 : index
    %c0_38 = arith.constant 0 : index
    %40 = vector.load %arg22[%c2_37, %c0_38] : memref<8x8xf32, #tpu.memory_space<vmem>>, vector<1x8xf32>
    tpu.vector_store %arg22[%c2_37, %c0_38], %39 {strides = array<i32>} : memref<8x8xf32, #tpu.memory_space<vmem>>, vector<1x8xf32>,
    %41 = arith.index_cast %9 : i32 to index
    %c0_39 = arith.constant 0 : index
    %42 = vector.load %arg4[%41, %c0_39] : memref<16x32xf32, #tpu.memory_space<vmem>>, vector<1x32xf32>
    %c3_40 = arith.constant 3 : index
    %c0_41 = arith.constant 0 : index
    %43 = vector.load %arg20[%c3_40, %c0_41] : memref<8x32xf32, #tpu.memory_space<vmem>>, vector<1x32xf32>
    tpu.vector_store %arg20[%c3_40, %c0_41], %42 {strides = array<i32>} : memref<8x32xf32, #tpu.memory_space<vmem>>, vector<1x32xf32>,
    %44 = arith.index_cast %9 : i32 to index
    %c0_42 = arith.constant 0 : index
    %45 = vector.load %arg5[%44, %c0_42] : memref<16x8xf32, #tpu.memory_space<vmem>>, vector<1x8xf32>
    %c3_43 = arith.constant 3 : index
    %c0_44 = arith.constant 0 : index
    %46 = vector.load %arg21[%c3_43, %c0_44] : memref<8x8xf32, #tpu.memory_space<vmem>>, vector<1x8xf32>
    tpu.vector_store %arg21[%c3_43, %c0_44], %45 {strides = array<i32>} : memref<8x8xf32, #tpu.memory_space<vmem>>, vector<1x8xf32>,
    %47 = arith.index_cast %9 : i32 to index
    %c0_45 = arith.constant 0 : index
    %48 = vector.load %arg6[%47, %c0_45] : memref<16x8xf32, #tpu.memory_space<vmem>>, vector<1x8xf32>
    %c3_46 = arith.constant 3 : index
    %c0_47 = arith.constant 0 : index
    %49 = vector.load %arg22[%c3_46, %c0_47] : memref<8x8xf32, #tpu.memory_space<vmem>>, vector<1x8xf32>
    tpu.vector_store %arg22[%c3_46, %c0_47], %48 {strides = array<i32>} : memref<8x8xf32, #tpu.memory_space<vmem>>, vector<1x8xf32>,
    %50 = arith.index_cast %10 : i32 to index
    %c0_48 = arith.constant 0 : index
    %51 = vector.load %arg4[%50, %c0_48] : memref<16x32xf32, #tpu.memory_space<vmem>>, vector<1x32xf32>
    %c4_49 = arith.constant 4 : index
    %c0_50 = arith.constant 0 : index
    %52 = vector.load %arg20[%c4_49, %c0_50] : memref<8x32xf32, #tpu.memory_space<vmem>>, vector<1x32xf32>
    tpu.vector_store %arg20[%c4_49, %c0_50], %51 {strides = array<i32>} : memref<8x32xf32, #tpu.memory_space<vmem>>, vector<1x32xf32>,
    %53 = arith.index_cast %10 : i32 to index
    %c0_51 = arith.constant 0 : index
    %54 = vector.load %arg5[%53, %c0_51] : memref<16x8xf32, #tpu.memory_space<vmem>>, vector<1x8xf32>
    %c4_52 = arith.constant 4 : index
    %c0_53 = arith.constant 0 : index
    %55 = vector.load %arg21[%c4_52, %c0_53] : memref<8x8xf32, #tpu.memory_space<vmem>>, vector<1x8xf32>
    tpu.vector_store %arg21[%c4_52, %c0_53], %54 {strides = array<i32>} : memref<8x8xf32, #tpu.memory_space<vmem>>, vector<1x8xf32>,
    %56 = arith.index_cast %10 : i32 to index
    %c0_54 = arith.constant 0 : index
    %57 = vector.load %arg6[%56, %c0_54] : memref<16x8xf32, #tpu.memory_space<vmem>>, vector<1x8xf32>
    %c4_55 = arith.constant 4 : index
    %c0_56 = arith.constant 0 : index
    %58 = vector.load %arg22[%c4_55, %c0_56] : memref<8x8xf32, #tpu.memory_space<vmem>>, vector<1x8xf32>
    tpu.vector_store %arg22[%c4_55, %c0_56], %57 {strides = array<i32>} : memref<8x8xf32, #tpu.memory_space<vmem>>, vector<1x8xf32>,
    %59 = arith.index_cast %11 : i32 to index
    %c0_57 = arith.constant 0 : index
    %60 = vector.load %arg4[%59, %c0_57] : memref<16x32xf32, #tpu.memory_space<vmem>>, vector<1x32xf32>
    %c5_58 = arith.constant 5 : index
    %c0_59 = arith.constant 0 : index
    %61 = vector.load %arg20[%c5_58, %c0_59] : memref<8x32xf32, #tpu.memory_space<vmem>>, vector<1x32xf32>
    tpu.vector_store %arg20[%c5_58, %c0_59], %60 {strides = array<i32>} : memref<8x32xf32, #tpu.memory_space<vmem>>, vector<1x32xf32>,
    %62 = arith.index_cast %11 : i32 to index
    %c0_60 = arith.constant 0 : index
    %63 = vector.load %arg5[%62, %c0_60] : memref<16x8xf32, #tpu.memory_space<vmem>>, vector<1x8xf32>
    %c5_61 = arith.constant 5 : index
    %c0_62 = arith.constant 0 : index
    %64 = vector.load %arg21[%c5_61, %c0_62] : memref<8x8xf32, #tpu.memory_space<vmem>>, vector<1x8xf32>
    tpu.vector_store %arg21[%c5_61, %c0_62], %63 {strides = array<i32>} : memref<8x8xf32, #tpu.memory_space<vmem>>, vector<1x8xf32>,
    %65 = arith.index_cast %11 : i32 to index
    %c0_63 = arith.constant 0 : index
    %66 = vector.load %arg6[%65, %c0_63] : memref<16x8xf32, #tpu.memory_space<vmem>>, vector<1x8xf32>
    %c5_64 = arith.constant 5 : index
    %c0_65 = arith.constant 0 : index
    %67 = vector.load %arg22[%c5_64, %c0_65] : memref<8x8xf32, #tpu.memory_space<vmem>>, vector<1x8xf32>
    tpu.vector_store %arg22[%c5_64, %c0_65], %66 {strides = array<i32>} : memref<8x8xf32, #tpu.memory_space<vmem>>, vector<1x8xf32>,
    %68 = arith.index_cast %12 : i32 to index
    %c0_66 = arith.constant 0 : index
    %69 = vector.load %arg4[%68, %c0_66] : memref<16x32xf32, #tpu.memory_space<vmem>>, vector<1x32xf32>
    %c6_67 = arith.constant 6 : index
    %c0_68 = arith.constant 0 : index
    %70 = vector.load %arg20[%c6_67, %c0_68] : memref<8x32xf32, #tpu.memory_space<vmem>>, vector<1x32xf32>
    tpu.vector_store %arg20[%c6_67, %c0_68], %69 {strides = array<i32>} : memref<8x32xf32, #tpu.memory_space<vmem>>, vector<1x32xf32>,
    %71 = arith.index_cast %12 : i32 to index
    %c0_69 = arith.constant 0 : index
    %72 = vector.load %arg5[%71, %c0_69] : memref<16x8xf32, #tpu.memory_space<vmem>>, vector<1x8xf32>
    %c6_70 = arith.constant 6 : index
    %c0_71 = arith.constant 0 : index
    %73 = vector.load %arg21[%c6_70, %c0_71] : memref<8x8xf32, #tpu.memory_space<vmem>>, vector<1x8xf32>
    tpu.vector_store %arg21[%c6_70, %c0_71], %72 {strides = array<i32>} : memref<8x8xf32, #tpu.memory_space<vmem>>, vector<1x8xf32>,
    %74 = arith.index_cast %12 : i32 to index
    %c0_72 = arith.constant 0 : index
    %75 = vector.load %arg6[%74, %c0_72] : memref<16x8xf32, #tpu.memory_space<vmem>>, vector<1x8xf32>
    %c6_73 = arith.constant 6 : index
    %c0_74 = arith.constant 0 : index
    %76 = vector.load %arg22[%c6_73, %c0_74] : memref<8x8xf32, #tpu.memory_space<vmem>>, vector<1x8xf32>
    tpu.vector_store %arg22[%c6_73, %c0_74], %75 {strides = array<i32>} : memref<8x8xf32, #tpu.memory_space<vmem>>, vector<1x8xf32>,
    %77 = arith.index_cast %13 : i32 to index
    %c0_75 = arith.constant 0 : index
    %78 = vector.load %arg4[%77, %c0_75] : memref<16x32xf32, #tpu.memory_space<vmem>>, vector<1x32xf32>
    %c7_76 = arith.constant 7 : index
    %c0_77 = arith.constant 0 : index
    %79 = vector.load %arg20[%c7_76, %c0_77] : memref<8x32xf32, #tpu.memory_space<vmem>>, vector<1x32xf32>
    tpu.vector_store %arg20[%c7_76, %c0_77], %78 {strides = array<i32>} : memref<8x32xf32, #tpu.memory_space<vmem>>, vector<1x32xf32>,
    %80 = arith.index_cast %13 : i32 to index
    %c0_78 = arith.constant 0 : index
    %81 = vector.load %arg5[%80, %c0_78] : memref<16x8xf32, #tpu.memory_space<vmem>>, vector<1x8xf32>
    %c7_79 = arith.constant 7 : index
    %c0_80 = arith.constant 0 : index
    %82 = vector.load %arg21[%c7_79, %c0_80] : memref<8x8xf32, #tpu.memory_space<vmem>>, vector<1x8xf32>
    tpu.vector_store %arg21[%c7_79, %c0_80], %81 {strides = array<i32>} : memref<8x8xf32, #tpu.memory_space<vmem>>, vector<1x8xf32>,
    %83 = arith.index_cast %13 : i32 to index
    %c0_81 = arith.constant 0 : index
    %84 = vector.load %arg6[%83, %c0_81] : memref<16x8xf32, #tpu.memory_space<vmem>>, vector<1x8xf32>
    %c7_82 = arith.constant 7 : index
    %c0_83 = arith.constant 0 : index
    %85 = vector.load %arg22[%c7_82, %c0_83] : memref<8x8xf32, #tpu.memory_space<vmem>>, vector<1x8xf32>
    tpu.vector_store %arg22[%c7_82, %c0_83], %84 {strides = array<i32>} : memref<8x8xf32, #tpu.memory_space<vmem>>, vector<1x8xf32>,
    %c0_84 = arith.constant 0 : index
    %86 = memref.load %arg1[%c0_84] : memref<1xf32, #tpu.memory_space<smem>>
    %c0_85 = arith.constant 0 : index
    %c0_86 = arith.constant 0 : index
    %87 = vector.load %arg2[%c0_85, %c0_86] : memref<8x8xf32, #tpu.memory_space<vmem>>, vector<8x8xf32>
    %c0_87 = arith.constant 0 : index
    %c0_88 = arith.constant 0 : index
    %88 = vector.load %arg3[%c0_87, %c0_88] : memref<8x8xf32, #tpu.memory_space<vmem>>, vector<8x8xf32>
    %c0_89 = arith.constant 0 : index
    %c0_90 = arith.constant 0 : index
    %89 = vector.load %arg21[%c0_89, %c0_90] : memref<8x8xf32, #tpu.memory_space<vmem>>, vector<8x8xf32>
    %c0_91 = arith.constant 0 : index
    %c0_92 = arith.constant 0 : index
    %90 = vector.load %arg22[%c0_91, %c0_92] : memref<8x8xf32, #tpu.memory_space<vmem>>, vector<8x8xf32>
    %c0_93 = arith.constant 0 : index
    %c0_94 = arith.constant 0 : index
    %91 = vector.load %arg20[%c0_93, %c0_94] : memref<8x32xf32, #tpu.memory_space<vmem>>, vector<8x32xf32>
    %cst = arith.constant 1.000000e+00 : f32
    %92 = vector.broadcast %cst : f32 to vector<8x8xf32>
    %93 = arith.subf %92, %88 : vector<8x8xf32>
    %94 = arith.mulf %89, %93 : vector<8x8xf32>
    %95 = arith.mulf %87, %88 : vector<8x8xf32>
    %96 = arith.addf %94, %95 : vector<8x8xf32>
    %cst_95 = arith.constant dense<0.000000e+00> : vector<8xf32>
    %97 = vector.multi_reduction <add>, %87, %cst_95 [0] : vector<8x8xf32> to vector<8xf32>
    %98 = vector.shape_cast %97 : vector<8xf32> to vector<1x8xf32>
    %cst_96 = arith.constant 9.99999997E-7 : f32
    %99 = vector.broadcast %cst_96 : f32 to vector<8x8xf32>
    %100 = arith.addf %88, %99 : vector<8x8xf32>
    %cst_97 = arith.constant dense<0.000000e+00> : vector<8xf32>
    %101 = vector.multi_reduction <add>, %100, %cst_97 [0] : vector<8x8xf32> to vector<8xf32>
    %102 = vector.shape_cast %101 : vector<8xf32> to vector<1x8xf32>
    %103 = arith.divf %98, %102 : vector<1x8xf32>
    %104 = vector.broadcast %86 : f32 to vector<8x8xf32>
    %105 = arith.subf %104, %90 : vector<8x8xf32>
    %106 = arith.mulf %90, %93 : vector<8x8xf32>
    %107 = vector.broadcast %86 : f32 to vector<8x8xf32>
    %108 = arith.mulf %107, %88 : vector<8x8xf32>
    %109 = arith.addf %106, %108 : vector<8x8xf32>
    %110 = arith.truncf %105 : vector<8x8xf32> to vector<8x8xbf16>
    %c0_98 = arith.constant 0 : index
    %c0_99 = arith.constant 0 : index
    %111 = vector.load %arg7[%c0_98, %c0_99] : memref<8x8xbf16, #tpu.memory_space<vmem>>, vector<8x8xbf16>
    %cst_100 = arith.constant dense<0.000000e+00> : vector<8x8xf32>
    %112 = tpu.matmul %110, %111, %cst_100 {dimension_numbers = #tpu.dot_dimension_numbers<[1], [0], [0], [1], [0, 0, 1, 1], [], []>} : vector<8x8xbf16>, vector<8x8xbf16>, vector<8x8xf32> -> vector<8x8xf32>
    %cst_101 = arith.constant 0.000000e+00 : f32
    %113 = vector.broadcast %cst_101 : f32 to vector<8x8xf32>
    %114 = arith.maximumf %113, %112 : vector<8x8xf32>
    %cst_102 = arith.constant 0.000000e+00 : f32
    %115 = vector.broadcast %cst_102 : f32 to vector<8x8xf32>
    %116 = arith.subf %115, %114 : vector<8x8xf32>
    %117 = math.exp %116 : vector<8x8xf32>
    %118 = arith.truncf %105 : vector<8x8xf32> to vector<8x8xbf16>
    %c0_103 = arith.constant 0 : index
    %c0_104 = arith.constant 0 : index
    %119 = vector.load %arg8[%c0_103, %c0_104] : memref<8x32xbf16, #tpu.memory_space<vmem>>, vector<8x32xbf16>
    %cst_105 = arith.constant dense<0.000000e+00> : vector<8x32xf32>
    %120 = tpu.matmul %118, %119, %cst_105 {dimension_numbers = #tpu.dot_dimension_numbers<[1], [0], [0], [1], [0, 0, 1, 1], [], []>} : vector<8x8xbf16>, vector<8x32xbf16>, vector<8x32xf32> -> vector<8x32xf32>
    %cst_106 = arith.constant 0.000000e+00 : f32
    %121 = vector.broadcast %cst_106 : f32 to vector<8x32xf32>
    %122 = arith.maximumf %121, %120 : vector<8x32xf32>
    %cst_107 = arith.constant 0.000000e+00 : f32
    %123 = vector.broadcast %cst_107 : f32 to vector<8x32xf32>
    %124 = arith.subf %123, %122 : vector<8x32xf32>
    %125 = math.exp %124 : vector<8x32xf32>
    %126 = arith.mulf %88, %87 : vector<8x8xf32>
    %127 = arith.mulf %117, %96 : vector<8x8xf32>
    %cst_108 = arith.constant 1.000000e+00 : f32
    %128 = vector.broadcast %cst_108 : f32 to vector<8x8xf32>
    %129 = arith.subf %128, %117 : vector<8x8xf32>
    %130 = vector.broadcast %103 : vector<1x8xf32> to vector<8x8xf32>
    %131 = arith.mulf %129, %130 : vector<8x8xf32>
    %132 = arith.addf %127, %131 : vector<8x8xf32>
    %133 = arith.mulf %93, %132 : vector<8x8xf32>
    %134 = arith.addf %126, %133 : vector<8x8xf32>
    %135 = arith.mulf %125, %91 : vector<8x32xf32>
    %136 = arith.truncf %134 : vector<8x8xf32> to vector<8x8xbf16>
    %c0_109 = arith.constant 0 : index
    %c0_110 = arith.constant 0 : index
    %137 = vector.load %arg9[%c0_109, %c0_110] : memref<8x64xbf16, #tpu.memory_space<vmem>>, vector<8x64xbf16>
    %cst_111 = arith.constant dense<0.000000e+00> : vector<8x64xf32>
    %138 = tpu.matmul %136, %137, %cst_111 {dimension_numbers = #tpu.dot_dimension_numbers<[1], [0], [0], [1], [0, 0, 1, 1], [], []>} : vector<8x8xbf16>, vector<8x64xbf16>, vector<8x64xf32> -> vector<8x64xf32>
    %139 = arith.truncf %135 : vector<8x32xf32> to vector<8x32xbf16>
    %c0_112 = arith.constant 0 : index
    %c0_113 = arith.constant 0 : index
    %140 = vector.load %arg10[%c0_112, %c0_113] : memref<32x64xbf16, #tpu.memory_space<vmem>>, vector<32x64xbf16>
    %cst_114 = arith.constant dense<0.000000e+00> : vector<8x64xf32>
    %141 = tpu.matmul %139, %140, %cst_114 {dimension_numbers = #tpu.dot_dimension_numbers<[1], [0], [0], [1], [0, 0, 1, 1], [], []>} : vector<8x32xbf16>, vector<32x64xbf16>, vector<8x64xf32> -> vector<8x64xf32>
    %142 = arith.addf %138, %141 : vector<8x64xf32>
    %143 = arith.truncf %88 : vector<8x8xf32> to vector<8x8xbf16>
    %c0_115 = arith.constant 0 : index
    %c0_116 = arith.constant 0 : index
    %144 = vector.load %arg11[%c0_115, %c0_116] : memref<8x64xbf16, #tpu.memory_space<vmem>>, vector<8x64xbf16>
    %cst_117 = arith.constant dense<0.000000e+00> : vector<8x64xf32>
    %145 = tpu.matmul %143, %144, %cst_117 {dimension_numbers = #tpu.dot_dimension_numbers<[1], [0], [0], [1], [0, 0, 1, 1], [], []>} : vector<8x8xbf16>, vector<8x64xbf16>, vector<8x64xf32> -> vector<8x64xf32>
    %146 = arith.addf %142, %145 : vector<8x64xf32>
    %c0_118 = arith.constant 0 : index
    %c0_119 = arith.constant 0 : index
    %147 = vector.load %arg12[%c0_118, %c0_119] : memref<1x64xf32, #tpu.memory_space<vmem>>, vector<1x64xf32>
    %148 = vector.broadcast %147 : vector<1x64xf32> to vector<8x64xf32>
    %149 = arith.addf %146, %148 : vector<8x64xf32>
    %150 = arith.negf %149 : vector<8x64xf32>
    %151 = math.exp %150 : vector<8x64xf32>
    %cst_120 = arith.constant 1.000000e+00 : f32
    %152 = vector.broadcast %cst_120 : f32 to vector<8x64xf32>
    %153 = arith.addf %152, %151 : vector<8x64xf32>
    %154 = arith.divf %152, %153 : vector<8x64xf32>
    %155 = vector.extract_strided_slice %154 {offsets = [0, 0], sizes = [8, 32], strides = [1, 1]} : vector<8x64xf32> to vector<8x32xf32>
    %156 = vector.extract_strided_slice %154 {offsets = [0, 32], sizes = [8, 32], strides = [1, 1]} : vector<8x64xf32> to vector<8x32xf32>
    %157 = arith.truncf %134 : vector<8x8xf32> to vector<8x8xbf16>
    %c0_121 = arith.constant 0 : index
    %c0_122 = arith.constant 0 : index
    %158 = vector.load %arg13[%c0_121, %c0_122] : memref<8x32xbf16, #tpu.memory_space<vmem>>, vector<8x32xbf16>
    %cst_123 = arith.constant dense<0.000000e+00> : vector<8x32xf32>
    %159 = tpu.matmul %157, %158, %cst_123 {dimension_numbers = #tpu.dot_dimension_numbers<[1], [0], [0], [1], [0, 0, 1, 1], [], []>} : vector<8x8xbf16>, vector<8x32xbf16>, vector<8x32xf32> -> vector<8x32xf32>
    %160 = arith.truncf %88 : vector<8x8xf32> to vector<8x8xbf16>
    %c0_124 = arith.constant 0 : index
    %c0_125 = arith.constant 0 : index
    %161 = vector.load %arg14[%c0_124, %c0_125] : memref<8x32xbf16, #tpu.memory_space<vmem>>, vector<8x32xbf16>
    %cst_126 = arith.constant dense<0.000000e+00> : vector<8x32xf32>
    %162 = tpu.matmul %160, %161, %cst_126 {dimension_numbers = #tpu.dot_dimension_numbers<[1], [0], [0], [1], [0, 0, 1, 1], [], []>} : vector<8x8xbf16>, vector<8x32xbf16>, vector<8x32xf32> -> vector<8x32xf32>
    %163 = arith.addf %159, %162 : vector<8x32xf32>
    %164 = arith.mulf %156, %135 : vector<8x32xf32>
    %165 = arith.truncf %164 : vector<8x32xf32> to vector<8x32xbf16>
    %c0_127 = arith.constant 0 : index
    %c0_128 = arith.constant 0 : index
    %166 = vector.load %arg15[%c0_127, %c0_128] : memref<32x32xbf16, #tpu.memory_space<vmem>>, vector<32x32xbf16>
    %cst_129 = arith.constant dense<0.000000e+00> : vector<8x32xf32>
    %167 = tpu.matmul %165, %166, %cst_129 {dimension_numbers = #tpu.dot_dimension_numbers<[1], [0], [0], [1], [0, 0, 1, 1], [], []>} : vector<8x32xbf16>, vector<32x32xbf16>, vector<8x32xf32> -> vector<8x32xf32>
    %168 = arith.addf %163, %167 : vector<8x32xf32>
    %c0_130 = arith.constant 0 : index
    %c0_131 = arith.constant 0 : index
    %169 = vector.load %arg16[%c0_130, %c0_131] : memref<1x32xf32, #tpu.memory_space<vmem>>, vector<1x32xf32>
    %170 = vector.broadcast %169 : vector<1x32xf32> to vector<8x32xf32>
    %171 = arith.addf %168, %170 : vector<8x32xf32>
    %172 = math.tanh %171 : vector<8x32xf32>
    %cst_132 = arith.constant 1.000000e+00 : f32
    %173 = vector.broadcast %cst_132 : f32 to vector<8x32xf32>
    %174 = arith.subf %173, %155 : vector<8x32xf32>
    %175 = arith.mulf %174, %135 : vector<8x32xf32>
    %176 = arith.mulf %155, %172 : vector<8x32xf32>
    %177 = arith.addf %175, %176 : vector<8x32xf32>
    %c0_133 = arith.constant 0 : index
    %c0_134 = arith.constant 0 : index
    %178 = vector.load %arg20[%c0_133, %c0_134] : memref<8x32xf32, #tpu.memory_space<vmem>>, vector<8x32xf32>
    tpu.vector_store %arg20[%c0_133, %c0_134], %177 {strides = array<i32>} : memref<8x32xf32, #tpu.memory_space<vmem>>, vector<8x32xf32>,
    %c0_135 = arith.constant 0 : index
    %c0_136 = arith.constant 0 : index
    %179 = vector.load %arg21[%c0_135, %c0_136] : memref<8x8xf32, #tpu.memory_space<vmem>>, vector<8x8xf32>
    tpu.vector_store %arg21[%c0_135, %c0_136], %96 {strides = array<i32>} : memref<8x8xf32, #tpu.memory_space<vmem>>, vector<8x8xf32>,
    %c0_137 = arith.constant 0 : index
    %c0_138 = arith.constant 0 : index
    %180 = vector.load %arg22[%c0_137, %c0_138] : memref<8x8xf32, #tpu.memory_space<vmem>>, vector<8x8xf32>
    tpu.vector_store %arg22[%c0_137, %c0_138], %109 {strides = array<i32>} : memref<8x8xf32, #tpu.memory_space<vmem>>, vector<8x8xf32>,
    %c0_139 = arith.constant 0 : index
    %c0_140 = arith.constant 0 : index
    %181 = vector.load %arg20[%c0_139, %c0_140] : memref<8x32xf32, #tpu.memory_space<vmem>>, vector<1x32xf32>
    %182 = arith.index_cast %6 : i32 to index
    %c0_141 = arith.constant 0 : index
    %183 = vector.load %arg17[%182, %c0_141] : memref<16x32xf32, #tpu.memory_space<vmem>>, vector<1x32xf32>
    tpu.vector_store %arg17[%182, %c0_141], %181 {strides = array<i32>} : memref<16x32xf32, #tpu.memory_space<vmem>>, vector<1x32xf32>,
    %c0_142 = arith.constant 0 : index
    %c0_143 = arith.constant 0 : index
    %184 = vector.load %arg21[%c0_142, %c0_143] : memref<8x8xf32, #tpu.memory_space<vmem>>, vector<1x8xf32>
    %185 = arith.index_cast %6 : i32 to index
    %c0_144 = arith.constant 0 : index
    %186 = vector.load %arg18[%185, %c0_144] : memref<16x8xf32, #tpu.memory_space<vmem>>, vector<1x8xf32>
    tpu.vector_store %arg18[%185, %c0_144], %184 {strides = array<i32>} : memref<16x8xf32, #tpu.memory_space<vmem>>, vector<1x8xf32>,
    %c0_145 = arith.constant 0 : index
    %c0_146 = arith.constant 0 : index
    %187 = vector.load %arg22[%c0_145, %c0_146] : memref<8x8xf32, #tpu.memory_space<vmem>>, vector<1x8xf32>
    %188 = arith.index_cast %6 : i32 to index
    %c0_147 = arith.constant 0 : index
    %189 = vector.load %arg19[%188, %c0_147] : memref<16x8xf32, #tpu.memory_space<vmem>>, vector<1x8xf32>
    tpu.vector_store %arg19[%188, %c0_147], %187 {strides = array<i32>} : memref<16x8xf32, #tpu.memory_space<vmem>>, vector<1x8xf32>,
    %c1_148 = arith.constant 1 : index
    %c0_149 = arith.constant 0 : index
    %190 = vector.load %arg20[%c1_148, %c0_149] : memref<8x32xf32, #tpu.memory_space<vmem>>, vector<1x32xf32>
    %191 = arith.index_cast %7 : i32 to index
    %c0_150 = arith.constant 0 : index
    %192 = vector.load %arg17[%191, %c0_150] : memref<16x32xf32, #tpu.memory_space<vmem>>, vector<1x32xf32>
    tpu.vector_store %arg17[%191, %c0_150], %190 {strides = array<i32>} : memref<16x32xf32, #tpu.memory_space<vmem>>, vector<1x32xf32>,
    %c1_151 = arith.constant 1 : index
    %c0_152 = arith.constant 0 : index
    %193 = vector.load %arg21[%c1_151, %c0_152] : memref<8x8xf32, #tpu.memory_space<vmem>>, vector<1x8xf32>
    %194 = arith.index_cast %7 : i32 to index
    %c0_153 = arith.constant 0 : index
    %195 = vector.load %arg18[%194, %c0_153] : memref<16x8xf32, #tpu.memory_space<vmem>>, vector<1x8xf32>
    tpu.vector_store %arg18[%194, %c0_153], %193 {strides = array<i32>} : memref<16x8xf32, #tpu.memory_space<vmem>>, vector<1x8xf32>,
    %c1_154 = arith.constant 1 : index
    %c0_155 = arith.constant 0 : index
    %196 = vector.load %arg22[%c1_154, %c0_155] : memref<8x8xf32, #tpu.memory_space<vmem>>, vector<1x8xf32>
    %197 = arith.index_cast %7 : i32 to index
    %c0_156 = arith.constant 0 : index
    %198 = vector.load %arg19[%197, %c0_156] : memref<16x8xf32, #tpu.memory_space<vmem>>, vector<1x8xf32>
    tpu.vector_store %arg19[%197, %c0_156], %196 {strides = array<i32>} : memref<16x8xf32, #tpu.memory_space<vmem>>, vector<1x8xf32>,
    %c2_157 = arith.constant 2 : index
    %c0_158 = arith.constant 0 : index
    %199 = vector.load %arg20[%c2_157, %c0_158] : memref<8x32xf32, #tpu.memory_space<vmem>>, vector<1x32xf32>
    %200 = arith.index_cast %8 : i32 to index
    %c0_159 = arith.constant 0 : index
    %201 = vector.load %arg17[%200, %c0_159] : memref<16x32xf32, #tpu.memory_space<vmem>>, vector<1x32xf32>
    tpu.vector_store %arg17[%200, %c0_159], %199 {strides = array<i32>} : memref<16x32xf32, #tpu.memory_space<vmem>>, vector<1x32xf32>,
    %c2_160 = arith.constant 2 : index
    %c0_161 = arith.constant 0 : index
    %202 = vector.load %arg21[%c2_160, %c0_161] : memref<8x8xf32, #tpu.memory_space<vmem>>, vector<1x8xf32>
    %203 = arith.index_cast %8 : i32 to index
    %c0_162 = arith.constant 0 : index
    %204 = vector.load %arg18[%203, %c0_162] : memref<16x8xf32, #tpu.memory_space<vmem>>, vector<1x8xf32>
    tpu.vector_store %arg18[%203, %c0_162], %202 {strides = array<i32>} : memref<16x8xf32, #tpu.memory_space<vmem>>, vector<1x8xf32>,
    %c2_163 = arith.constant 2 : index
    %c0_164 = arith.constant 0 : index
    %205 = vector.load %arg22[%c2_163, %c0_164] : memref<8x8xf32, #tpu.memory_space<vmem>>, vector<1x8xf32>
    %206 = arith.index_cast %8 : i32 to index
    %c0_165 = arith.constant 0 : index
    %207 = vector.load %arg19[%206, %c0_165] : memref<16x8xf32, #tpu.memory_space<vmem>>, vector<1x8xf32>
    tpu.vector_store %arg19[%206, %c0_165], %205 {strides = array<i32>} : memref<16x8xf32, #tpu.memory_space<vmem>>, vector<1x8xf32>,
    %c3_166 = arith.constant 3 : index
    %c0_167 = arith.constant 0 : index
    %208 = vector.load %arg20[%c3_166, %c0_167] : memref<8x32xf32, #tpu.memory_space<vmem>>, vector<1x32xf32>
    %209 = arith.index_cast %9 : i32 to index
    %c0_168 = arith.constant 0 : index
    %210 = vector.load %arg17[%209, %c0_168] : memref<16x32xf32, #tpu.memory_space<vmem>>, vector<1x32xf32>
    tpu.vector_store %arg17[%209, %c0_168], %208 {strides = array<i32>} : memref<16x32xf32, #tpu.memory_space<vmem>>, vector<1x32xf32>,
    %c3_169 = arith.constant 3 : index
    %c0_170 = arith.constant 0 : index
    %211 = vector.load %arg21[%c3_169, %c0_170] : memref<8x8xf32, #tpu.memory_space<vmem>>, vector<1x8xf32>
    %212 = arith.index_cast %9 : i32 to index
    %c0_171 = arith.constant 0 : index
    %213 = vector.load %arg18[%212, %c0_171] : memref<16x8xf32, #tpu.memory_space<vmem>>, vector<1x8xf32>
    tpu.vector_store %arg18[%212, %c0_171], %211 {strides = array<i32>} : memref<16x8xf32, #tpu.memory_space<vmem>>, vector<1x8xf32>,
    %c3_172 = arith.constant 3 : index
    %c0_173 = arith.constant 0 : index
    %214 = vector.load %arg22[%c3_172, %c0_173] : memref<8x8xf32, #tpu.memory_space<vmem>>, vector<1x8xf32>
    %215 = arith.index_cast %9 : i32 to index
    %c0_174 = arith.constant 0 : index
    %216 = vector.load %arg19[%215, %c0_174] : memref<16x8xf32, #tpu.memory_space<vmem>>, vector<1x8xf32>
    tpu.vector_store %arg19[%215, %c0_174], %214 {strides = array<i32>} : memref<16x8xf32, #tpu.memory_space<vmem>>, vector<1x8xf32>,
    %c4_175 = arith.constant 4 : index
    %c0_176 = arith.constant 0 : index
    %217 = vector.load %arg20[%c4_175, %c0_176] : memref<8x32xf32, #tpu.memory_space<vmem>>, vector<1x32xf32>
    %218 = arith.index_cast %10 : i32 to index
    %c0_177 = arith.constant 0 : index
    %219 = vector.load %arg17[%218, %c0_177] : memref<16x32xf32, #tpu.memory_space<vmem>>, vector<1x32xf32>
    tpu.vector_store %arg17[%218, %c0_177], %217 {strides = array<i32>} : memref<16x32xf32, #tpu.memory_space<vmem>>, vector<1x32xf32>,
    %c4_178 = arith.constant 4 : index
    %c0_179 = arith.constant 0 : index
    %220 = vector.load %arg21[%c4_178, %c0_179] : memref<8x8xf32, #tpu.memory_space<vmem>>, vector<1x8xf32>
    %221 = arith.index_cast %10 : i32 to index
    %c0_180 = arith.constant 0 : index
    %222 = vector.load %arg18[%221, %c0_180] : memref<16x8xf32, #tpu.memory_space<vmem>>, vector<1x8xf32>
    tpu.vector_store %arg18[%221, %c0_180], %220 {strides = array<i32>} : memref<16x8xf32, #tpu.memory_space<vmem>>, vector<1x8xf32>,
    %c4_181 = arith.constant 4 : index
    %c0_182 = arith.constant 0 : index
    %223 = vector.load %arg22[%c4_181, %c0_182] : memref<8x8xf32, #tpu.memory_space<vmem>>, vector<1x8xf32>
    %224 = arith.index_cast %10 : i32 to index
    %c0_183 = arith.constant 0 : index
    %225 = vector.load %arg19[%224, %c0_183] : memref<16x8xf32, #tpu.memory_space<vmem>>, vector<1x8xf32>
    tpu.vector_store %arg19[%224, %c0_183], %223 {strides = array<i32>} : memref<16x8xf32, #tpu.memory_space<vmem>>, vector<1x8xf32>,
    %c5_184 = arith.constant 5 : index
    %c0_185 = arith.constant 0 : index
    %226 = vector.load %arg20[%c5_184, %c0_185] : memref<8x32xf32, #tpu.memory_space<vmem>>, vector<1x32xf32>
    %227 = arith.index_cast %11 : i32 to index
    %c0_186 = arith.constant 0 : index
    %228 = vector.load %arg17[%227, %c0_186] : memref<16x32xf32, #tpu.memory_space<vmem>>, vector<1x32xf32>
    tpu.vector_store %arg17[%227, %c0_186], %226 {strides = array<i32>} : memref<16x32xf32, #tpu.memory_space<vmem>>, vector<1x32xf32>,
    %c5_187 = arith.constant 5 : index
    %c0_188 = arith.constant 0 : index
    %229 = vector.load %arg21[%c5_187, %c0_188] : memref<8x8xf32, #tpu.memory_space<vmem>>, vector<1x8xf32>
    %230 = arith.index_cast %11 : i32 to index
    %c0_189 = arith.constant 0 : index
    %231 = vector.load %arg18[%230, %c0_189] : memref<16x8xf32, #tpu.memory_space<vmem>>, vector<1x8xf32>
    tpu.vector_store %arg18[%230, %c0_189], %229 {strides = array<i32>} : memref<16x8xf32, #tpu.memory_space<vmem>>, vector<1x8xf32>,
    %c5_190 = arith.constant 5 : index
    %c0_191 = arith.constant 0 : index
    %232 = vector.load %arg22[%c5_190, %c0_191] : memref<8x8xf32, #tpu.memory_space<vmem>>, vector<1x8xf32>
    %233 = arith.index_cast %11 : i32 to index
    %c0_192 = arith.constant 0 : index
    %234 = vector.load %arg19[%233, %c0_192] : memref<16x8xf32, #tpu.memory_space<vmem>>, vector<1x8xf32>
    tpu.vector_store %arg19[%233, %c0_192], %232 {strides = array<i32>} : memref<16x8xf32, #tpu.memory_space<vmem>>, vector<1x8xf32>,
    %c6_193 = arith.constant 6 : index
    %c0_194 = arith.constant 0 : index
    %235 = vector.load %arg20[%c6_193, %c0_194] : memref<8x32xf32, #tpu.memory_space<vmem>>, vector<1x32xf32>
    %236 = arith.index_cast %12 : i32 to index
    %c0_195 = arith.constant 0 : index
    %237 = vector.load %arg17[%236, %c0_195] : memref<16x32xf32, #tpu.memory_space<vmem>>, vector<1x32xf32>
    tpu.vector_store %arg17[%236, %c0_195], %235 {strides = array<i32>} : memref<16x32xf32, #tpu.memory_space<vmem>>, vector<1x32xf32>,
    %c6_196 = arith.constant 6 : index
    %c0_197 = arith.constant 0 : index
    %238 = vector.load %arg21[%c6_196, %c0_197] : memref<8x8xf32, #tpu.memory_space<vmem>>, vector<1x8xf32>
    %239 = arith.index_cast %12 : i32 to index
    %c0_198 = arith.constant 0 : index
    %240 = vector.load %arg18[%239, %c0_198] : memref<16x8xf32, #tpu.memory_space<vmem>>, vector<1x8xf32>
    tpu.vector_store %arg18[%239, %c0_198], %238 {strides = array<i32>} : memref<16x8xf32, #tpu.memory_space<vmem>>, vector<1x8xf32>,
    %c6_199 = arith.constant 6 : index
    %c0_200 = arith.constant 0 : index
    %241 = vector.load %arg22[%c6_199, %c0_200] : memref<8x8xf32, #tpu.memory_space<vmem>>, vector<1x8xf32>
    %242 = arith.index_cast %12 : i32 to index
    %c0_201 = arith.constant 0 : index
    %243 = vector.load %arg19[%242, %c0_201] : memref<16x8xf32, #tpu.memory_space<vmem>>, vector<1x8xf32>
    tpu.vector_store %arg19[%242, %c0_201], %241 {strides = array<i32>} : memref<16x8xf32, #tpu.memory_space<vmem>>, vector<1x8xf32>,
    %c7_202 = arith.constant 7 : index
    %c0_203 = arith.constant 0 : index
    %244 = vector.load %arg20[%c7_202, %c0_203] : memref<8x32xf32, #tpu.memory_space<vmem>>, vector<1x32xf32>
    %245 = arith.index_cast %13 : i32 to index
    %c0_204 = arith.constant 0 : index
    %246 = vector.load %arg17[%245, %c0_204] : memref<16x32xf32, #tpu.memory_space<vmem>>, vector<1x32xf32>
    tpu.vector_store %arg17[%245, %c0_204], %244 {strides = array<i32>} : memref<16x32xf32, #tpu.memory_space<vmem>>, vector<1x32xf32>,
    %c7_205 = arith.constant 7 : index
    %c0_206 = arith.constant 0 : index
    %247 = vector.load %arg21[%c7_205, %c0_206] : memref<8x8xf32, #tpu.memory_space<vmem>>, vector<1x8xf32>
    %248 = arith.index_cast %13 : i32 to index
    %c0_207 = arith.constant 0 : index
    %249 = vector.load %arg18[%248, %c0_207] : memref<16x8xf32, #tpu.memory_space<vmem>>, vector<1x8xf32>
    tpu.vector_store %arg18[%248, %c0_207], %247 {strides = array<i32>} : memref<16x8xf32, #tpu.memory_space<vmem>>, vector<1x8xf32>,
    %c7_208 = arith.constant 7 : index
    %c0_209 = arith.constant 0 : index
    %250 = vector.load %arg22[%c7_208, %c0_209] : memref<8x8xf32, #tpu.memory_space<vmem>>, vector<1x8xf32>
    %251 = arith.index_cast %13 : i32 to index
    %c0_210 = arith.constant 0 : index
    %252 = vector.load %arg19[%251, %c0_210] : memref<16x8xf32, #tpu.memory_space<vmem>>, vector<1x8xf32>
    tpu.vector_store %arg19[%251, %c0_210], %250 {strides = array<i32>} : memref<16x8xf32, #tpu.memory_space<vmem>>, vector<1x8xf32>,
    return
  }
}

</mosaic_0001>

<llo_original>
// kernel: mgn_gru_d_forward.1
$region0: #{mgn_gru_d_forward.1}
  #allocation0 [shape = 'u32[]', space=smem, size = 0x4, offset = 0x4, fixed_abs, tag = 'smem constant byte address 0x4 - core index']
  #allocation1 [shape = 'u32[144,128]{1,0:T(1,128)}', space=vmem, size = 0x12000, scoped, tag = 'internal scratch']
  #allocation2 [shape = 'f32[8,32]{1,0:T(8,128)}', space=vmem, size = 0x1000, scoped, tag = 'scratch operand']
  #allocation3 [shape = 'f32[8,8]{1,0:T(8,128)}', space=vmem, size = 0x1000, scoped, tag = 'scratch operand']
  #allocation4 [shape = 'f32[8,8]{1,0:T(8,128)}', space=vmem, size = 0x1000, scoped, tag = 'scratch operand']
  #allocation5 [shape = 'f32[1]{0:T(128)S(6)}', space=smem, size = 0x200, scoped, tag = 'scoped memory for mgn_gru_d_forward.1']
  %s0 = inlined_call_operand.vmem [shape: s32[8], index: 0, kind: input, shape index: {}]
  %s1 = inlined_call_operand.<no memory space> [shape: f32[1], index: 1, kind: input, shape index: {}]
  %s2 = inlined_call_operand.vmem [shape: f32[8,8], index: 2, kind: input, shape index: {}]
  %s3 = inlined_call_operand.vmem [shape: f32[8,8], index: 3, kind: input, shape index: {}]
  %s4 = inlined_call_operand.vmem [shape: f32[16,32], index: 4, kind: input, shape index: {}, may-alias: {4,17}]
  %s5 = inlined_call_operand.vmem [shape: f32[16,8], index: 5, kind: input, shape index: {}, may-alias: {5,18}]
  %s6 = inlined_call_operand.vmem [shape: f32[16,8], index: 6, kind: input, shape index: {}, may-alias: {6,19}]
  %s7 = inlined_call_operand.hbm [shape: bf16[8,8], index: 7, kind: input, shape index: {}]
  %s8 = inlined_call_operand.hbm [shape: bf16[8,32], index: 8, kind: input, shape index: {}]
  %s9 = inlined_call_operand.vmem [shape: bf16[8,64], index: 9, kind: input, shape index: {}]
  %s10 = inlined_call_operand.vmem [shape: bf16[32,64], index: 10, kind: input, shape index: {}]
  %s11 = inlined_call_operand.hbm [shape: bf16[8,64], index: 11, kind: input, shape index: {}]
  %s12 = inlined_call_operand.hbm [shape: f32[1,64], index: 12, kind: input, shape index: {}]
  %s13 = inlined_call_operand.hbm [shape: bf16[8,32], index: 13, kind: input, shape index: {}]
  %s14 = inlined_call_operand.hbm [shape: bf16[8,32], index: 14, kind: input, shape index: {}]
  %s15 = inlined_call_operand.vmem [shape: bf16[32,32], index: 15, kind: input, shape index: {}]
  %s16 = inlined_call_operand.hbm [shape: f32[1,32], index: 16, kind: input, shape index: {}]
  %s17 = inlined_call_operand.vmem [shape: f32[16,32], index: 17, kind: output, shape index: {0}, may-alias: {4,17}]
  %s18 = inlined_call_operand.vmem [shape: f32[16,8], index: 18, kind: output, shape index: {1}, may-alias: {5,18}]
  %s19 = inlined_call_operand.vmem [shape: f32[16,8], index: 19, kind: output, shape index: {2}, may-alias: {6,19}]
  %20 = xla_tuple %s17, %s18, %s19
  %s21 = sld [smem:[#allocation0]]
  $region126: #{mgn_gru_d_forward.1} parent=0
    _
  %s23 = ssub.s32 1, %s21
  %s24 = scalar_select 0, %s23, %s21
  %25 = sst [smem:[#allocation5]] %s1
  $region1: #{mgn_gru_d_forward.1} parent=0
    #allocation6 [shape = 'u8[512]{0}', space=smem, size = 0x200, scoped, tag = 'input window, operand 0, single buffered']
    #allocation7 [shape = 's32[1]{0}', space=sflag, size = 0x4, scoped, tag = 'scoped memory for mgn_gru_d_forward.1']
    #allocation8 [shape = 's32[1]{0}', space=sflag, size = 0x4, scoped, tag = 'scoped memory for mgn_gru_d_forward.1']
    #allocation9 [shape = 'u8[2048]{0}', space=vmem, size = 0x800, scoped, tag = 'input window, operand 7, single buffered']
    #allocation10 [shape = 'u8[2048]{0}', space=vmem, size = 0x800, scoped, tag = 'input window, operand 8, single buffered']
    #allocation11 [shape = 's32[1]{0}', space=sflag, size = 0x4, scoped, tag = 'scoped memory for mgn_gru_d_forward.1']
    #allocation12 [shape = 'u8[2048]{0}', space=vmem, size = 0x800, scoped, tag = 'input window, operand 11, single buffered']
    #allocation13 [shape = 'u8[512]{0}', space=vmem, size = 0x400, scoped, tag = 'input window, operand 12, single buffered']
    #allocation14 [shape = 's32[1]{0}', space=sflag, size = 0x4, scoped, tag = 'scoped memory for mgn_gru_d_forward.1']
    #allocation15 [shape = 'u8[2048]{0}', space=vmem, size = 0x800, scoped, tag = 'input window, operand 13, single buffered']
    #allocation16 [shape = 'u8[2048]{0}', space=vmem, size = 0x800, scoped, tag = 'input window, operand 14, single buffered']
    #allocation17 [shape = 's32[1]{0}', space=sflag, size = 0x4, scoped, tag = 'scoped memory for mgn_gru_d_forward.1']
    #allocation18 [shape = 'u8[512]{0}', space=vmem, size = 0x400, scoped, tag = 'input window, operand 16, single buffered']
    %26 = vsyncpa [#allocation8], 0
    %27 = vsyncpa [#allocation7], 0
    %28 = vsyncpa [#allocation11], 0
    %29 = vsyncpa [#allocation14], 0
    %30 = vsyncpa [#allocation17], 0
    // Predicated region
    $region2: #{mgn_gru_d_forward.1} parent=1 // pred_check
      _
    $region3: #{mgn_gru_d_forward.1} parent=1 // pred_check_branch
      %32 = sbr.rel (0) target = $region5
    $region4: #{mgn_gru_d_forward.1} parent=1 // pred_region
      %s34 = ssub.s32 16, 16
      %35 = vsyncadd [#allocation8], %s34
      %s37 = sshll.u32 %s0, 4
      %s38 = int_to_ptr.vmem [resolvable:$true] %s37
      %40 = dma.vmem_to_smem %s38, 16, [#allocation6], [#allocation8]
    $region5: #{mgn_gru_d_forward.1} parent=1 // pred_fallthru
      _
    // Predicated region
    $region6: #{mgn_gru_d_forward.1} parent=1 // pred_check
      _
    $region7: #{mgn_gru_d_forward.1} parent=1 // pred_check_branch
      %42 = sbr.rel (0) target = $region9
    $region8: #{mgn_gru_d_forward.1} parent=1 // pred_region
      _
    $region9: #{mgn_gru_d_forward.1} parent=1 // pred_fallthru
      _
    // Predicated region
    $region10: #{mgn_gru_d_forward.1} parent=1 // pred_check
      _
    $region11: #{mgn_gru_d_forward.1} parent=1 // pred_check_branch
      %44 = sbr.rel (0) target = $region13
    $region12: #{mgn_gru_d_forward.1} parent=1 // pred_region
      _
    $region13: #{mgn_gru_d_forward.1} parent=1 // pred_fallthru
      _
    // Predicated region
    $region14: #{mgn_gru_d_forward.1} parent=1 // pred_check
      _
    $region15: #{mgn_gru_d_forward.1} parent=1 // pred_check_branch
      %46 = sbr.rel (0) target = $region17
    $region16: #{mgn_gru_d_forward.1} parent=1 // pred_region
      _
    $region17: #{mgn_gru_d_forward.1} parent=1 // pred_fallthru
      _
    // Predicated region
    $region18: #{mgn_gru_d_forward.1} parent=1 // pred_check
      _
    $region19: #{mgn_gru_d_forward.1} parent=1 // pred_check_branch
      %48 = sbr.rel (0) target = $region21
    $region20: #{mgn_gru_d_forward.1} parent=1 // pred_region
      _
    $region21: #{mgn_gru_d_forward.1} parent=1 // pred_fallthru
      _
    // Predicated region
    $region22: #{mgn_gru_d_forward.1} parent=1 // pred_check
      _
    $region23: #{mgn_gru_d_forward.1} parent=1 // pred_check_branch
      %50 = sbr.rel (0) target = $region25
    $region24: #{mgn_gru_d_forward.1} parent=1 // pred_region
      _
    $region25: #{mgn_gru_d_forward.1} parent=1 // pred_fallthru
      _
    // Predicated region
    $region26: #{mgn_gru_d_forward.1} parent=1 // pred_check
      _
    $region27: #{mgn_gru_d_forward.1} parent=1 // pred_check_branch
      %52 = sbr.rel (0) target = $region29
    $region28: #{mgn_gru_d_forward.1} parent=1 // pred_region
      _
    $region29: #{mgn_gru_d_forward.1} parent=1 // pred_fallthru
      _
    // Predicated region
    $region30: #{mgn_gru_d_forward.1} parent=1 // pred_check
      _
    $region31: #{mgn_gru_d_forward.1} parent=1 // pred_check_branch
      %54 = sbr.rel (0) target = $region33
    $region32: #{mgn_gru_d_forward.1} parent=1 // pred_region
      %s56 = ssub.s32 64, 64
      %57 = vsyncadd [#allocation7], %s56
      %s59 = sshll.u32 [#allocation9], 4
      %s60 = int_to_ptr.vmem [resolvable:$true] %s59
      %62 = dma.hbm_to_vmem [thread:$0]  %s7, 64, %s60, [#allocation7]
    $region33: #{mgn_gru_d_forward.1} parent=1 // pred_fallthru
      _
    // Predicated region
    $region34: #{mgn_gru_d_forward.1} parent=1 // pred_check
      _
    $region35: #{mgn_gru_d_forward.1} parent=1 // pred_check_branch
      %64 = sbr.rel (0) target = $region37
    $region36: #{mgn_gru_d_forward.1} parent=1 // pred_region
      %s66 = ssub.s32 64, 64
      %67 = vsyncadd [#allocation11], %s66
      %s69 = sshll.u32 [#allocation10], 4
      %s70 = int_to_ptr.vmem [resolvable:$true] %s69
      %72 = dma.hbm_to_vmem [thread:$0]  %s8, 64, %s70, [#allocation11]
    $region37: #{mgn_gru_d_forward.1} parent=1 // pred_fallthru
      _
    // Predicated region
    $region38: #{mgn_gru_d_forward.1} parent=1 // pred_check
      _
    $region39: #{mgn_gru_d_forward.1} parent=1 // pred_check_branch
      %74 = sbr.rel (0) target = $region41
    $region40: #{mgn_gru_d_forward.1} parent=1 // pred_region
      _
    $region41: #{mgn_gru_d_forward.1} parent=1 // pred_fallthru
      _
    // Predicated region
    $region42: #{mgn_gru_d_forward.1} parent=1 // pred_check
      _
    $region43: #{mgn_gru_d_forward.1} parent=1 // pred_check_branch
      %76 = sbr.rel (0) target = $region45
    $region44: #{mgn_gru_d_forward.1} parent=1 // pred_region
      _
    $region45: #{mgn_gru_d_forward.1} parent=1 // pred_fallthru
      _
    // Predicated region
    $region46: #{mgn_gru_d_forward.1} parent=1 // pred_check
      _
    $region47: #{mgn_gru_d_forward.1} parent=1 // pred_check_branch
      %78 = sbr.rel (0) target = $region49
    $region48: #{mgn_gru_d_forward.1} parent=1 // pred_region
      %s80 = ssub.s32 64, 64
      %81 = vsyncadd [#allocation11], %s80
      %s83 = sshll.u32 [#allocation12], 4
      %s84 = int_to_ptr.vmem [resolvable:$true] %s83
      %86 = dma.hbm_to_vmem [thread:$0]  %s11, 64, %s84, [#allocation11]
    $region49: #{mgn_gru_d_forward.1} parent=1 // pred_fallthru
      _
    // Predicated region
    $region50: #{mgn_gru_d_forward.1} parent=1 // pred_check
      _
    $region51: #{mgn_gru_d_forward.1} parent=1 // pred_check_branch
      %88 = sbr.rel (0) target = $region53
    $region52: #{mgn_gru_d_forward.1} parent=1 // pred_region
      %s90 = ssub.s32 16, 16
      %91 = vsyncadd [#allocation14], %s90
      %s93 = sshll.u32 [#allocation13], 4
      %s94 = int_to_ptr.vmem [resolvable:$true] %s93
      %96 = dma.hbm_to_vmem [thread:$0]  %s12, 16, %s94, [#allocation14]
    $region53: #{mgn_gru_d_forward.1} parent=1 // pred_fallthru
      _
    // Predicated region
    $region54: #{mgn_gru_d_forward.1} parent=1 // pred_check
      _
    $region55: #{mgn_gru_d_forward.1} parent=1 // pred_check_branch
      %98 = sbr.rel (0) target = $region57
    $region56: #{mgn_gru_d_forward.1} parent=1 // pred_region
      %s100 = ssub.s32 64, 64
      %101 = vsyncadd [#allocation14], %s100
      %s103 = sshll.u32 [#allocation15], 4
      %s104 = int_to_ptr.vmem [resolvable:$true] %s103
      %106 = dma.hbm_to_vmem [thread:$0]  %s13, 64, %s104, [#allocation14]
    $region57: #{mgn_gru_d_forward.1} parent=1 // pred_fallthru
      _
    // Predicated region
    $region58: #{mgn_gru_d_forward.1} parent=1 // pred_check
      _
    $region59: #{mgn_gru_d_forward.1} parent=1 // pred_check_branch
      %108 = sbr.rel (0) target = $region61
    $region60: #{mgn_gru_d_forward.1} parent=1 // pred_region
      %s110 = ssub.s32 64, 64
      %111 = vsyncadd [#allocation17], %s110
      %s113 = sshll.u32 [#allocation16], 4
      %s114 = int_to_ptr.vmem [resolvable:$true] %s113
      %116 = dma.hbm_to_vmem [thread:$0]  %s14, 64, %s114, [#allocation17]
    $region61: #{mgn_gru_d_forward.1} parent=1 // pred_fallthru
      _
    // Predicated region
    $region62: #{mgn_gru_d_forward.1} parent=1 // pred_check
      _
    $region63: #{mgn_gru_d_forward.1} parent=1 // pred_check_branch
      %118 = sbr.rel (0) target = $region65
    $region64: #{mgn_gru_d_forward.1} parent=1 // pred_region
      _
    $region65: #{mgn_gru_d_forward.1} parent=1 // pred_fallthru
      _
    // Predicated region
    $region66: #{mgn_gru_d_forward.1} parent=1 // pred_check
      _
    $region67: #{mgn_gru_d_forward.1} parent=1 // pred_check_branch
      %120 = sbr.rel (0) target = $region69
    $region68: #{mgn_gru_d_forward.1} parent=1 // pred_region
      %s122 = ssub.s32 16, 16
      %123 = vsyncadd [#allocation17], %s122
      %s125 = sshll.u32 [#allocation18], 4
      %s126 = int_to_ptr.vmem [resolvable:$true] %s125
      %128 = dma.hbm_to_vmem [thread:$0]  %s16, 16, %s126, [#allocation17]
    $region69: #{mgn_gru_d_forward.1} parent=1 // pred_fallthru
      _
    // Predicated region
    $region70: #{mgn_gru_d_forward.1} parent=1 // pred_check
      _
    $region71: #{mgn_gru_d_forward.1} parent=1 // pred_check_branch
      %130 = sbr.rel (0) target = $region73
    $region72: #{mgn_gru_d_forward.1} parent=1 // pred_region
      %131 = dma.done [#allocation8], 16
    $region73: #{mgn_gru_d_forward.1} parent=1 // pred_fallthru
      _
    // Predicated region
    $region74: #{mgn_gru_d_forward.1} parent=1 // pred_check
      _
    $region75: #{mgn_gru_d_forward.1} parent=1 // pred_check_branch
      %133 = sbr.rel (0) target = $region77
    $region76: #{mgn_gru_d_forward.1} parent=1 // pred_region
      %134 = dma.done [#allocation7], 64
    $region77: #{mgn_gru_d_forward.1} parent=1 // pred_fallthru
      _
    // Predicated region
    $region78: #{mgn_gru_d_forward.1} parent=1 // pred_check
      _
    $region79: #{mgn_gru_d_forward.1} parent=1 // pred_check_branch
      %136 = sbr.rel (0) target = $region81
    $region80: #{mgn_gru_d_forward.1} parent=1 // pred_region
      %137 = dma.done [#allocation11], 64
    $region81: #{mgn_gru_d_forward.1} parent=1 // pred_fallthru
      _
    // Predicated region
    $region82: #{mgn_gru_d_forward.1} parent=1 // pred_check
      _
    $region83: #{mgn_gru_d_forward.1} parent=1 // pred_check_branch
      %139 = sbr.rel (0) target = $region85
    $region84: #{mgn_gru_d_forward.1} parent=1 // pred_region
      %140 = dma.done [#allocation11], 64
    $region85: #{mgn_gru_d_forward.1} parent=1 // pred_fallthru
      _
    // Predicated region
    $region86: #{mgn_gru_d_forward.1} parent=1 // pred_check
      _
    $region87: #{mgn_gru_d_forward.1} parent=1 // pred_check_branch
      %142 = sbr.rel (0) target = $region89
    $region88: #{mgn_gru_d_forward.1} parent=1 // pred_region
      %143 = dma.done [#allocation14], 16
    $region89: #{mgn_gru_d_forward.1} parent=1 // pred_fallthru
      _
    // Predicated region
    $region90: #{mgn_gru_d_forward.1} parent=1 // pred_check
      _
    $region91: #{mgn_gru_d_forward.1} parent=1 // pred_check_branch
      %145 = sbr.rel (0) target = $region93
    $region92: #{mgn_gru_d_forward.1} parent=1 // pred_region
      %146 = dma.done [#allocation14], 64
    $region93: #{mgn_gru_d_forward.1} parent=1 // pred_fallthru
      _
    // Predicated region
    $region94: #{mgn_gru_d_forward.1} parent=1 // pred_check
      _
    $region95: #{mgn_gru_d_forward.1} parent=1 // pred_check_branch
      %148 = sbr.rel (0) target = $region97
    $region96: #{mgn_gru_d_forward.1} parent=1 // pred_region
      %149 = dma.done [#allocation17], 64
    $region97: #{mgn_gru_d_forward.1} parent=1 // pred_fallthru
      _
    // Predicated region
    $region98: #{mgn_gru_d_forward.1} parent=1 // pred_check
      _
    $region99: #{mgn_gru_d_forward.1} parent=1 // pred_check_branch
      %151 = sbr.rel (0) target = $region101
    $region100: #{mgn_gru_d_forward.1} parent=1 // pred_region
      %152 = dma.done [#allocation17], 16
    $region101: #{mgn_gru_d_forward.1} parent=1 // pred_fallthru
      _
    %153 = sfence
    %v155 = vld [vmem:[%s4] sm:$0xff]
    %v156 = vld [vmem:[%s4 + $0x8] sm:$0xff]
    %vm157 = vcmask 261120
    %158 = vst.msk [vmem:[%s17] sm:$0xff] %vm157, %v155
    %159 = vst.msk [vmem:[%s17 + $0x8] sm:$0xff] %vm157, %v156
    %v160 = vld [vmem:[%s5] sm:$0xff]
    %v161 = vld [vmem:[%s5 + $0x8] sm:$0xff]
    %vm162 = vcmask 64512
    %163 = vst.msk [vmem:[%s18] sm:$0xff] %vm162, %v160
    %164 = vst.msk [vmem:[%s18 + $0x8] sm:$0xff] %vm162, %v161
    %v165 = vld [vmem:[%s6] sm:$0xff]
    %v166 = vld [vmem:[%s6 + $0x8] sm:$0xff]
    %167 = vst.msk [vmem:[%s19] sm:$0xff] %vm162, %v165
    %168 = vst.msk [vmem:[%s19 + $0x8] sm:$0xff] %vm162, %v166
    %s169 = sld [smem:[#allocation6]]
    %s170 = sld [smem:[#allocation6 + $0x1]]
    %s171 = sld [smem:[#allocation6 + $0x2]]
    %s172 = sld [smem:[#allocation6 + $0x3]]
    %s173 = sld [smem:[#allocation6 + $0x4]]
    %s174 = sld [smem:[#allocation6 + $0x5]]
    %s175 = sld [smem:[#allocation6 + $0x6]]
    %s176 = sld [smem:[#allocation6 + $0x7]]
    %s177 = scalar_lea.vmem %s4, %s169
    %v178 = vld [vmem:[%s177] sm:$0x1]
    %vm179 = vcmask 253952
    %180 = vst.msk [vmem:[#allocation2] sm:$0x1] %vm179, %v178
    %s181 = scalar_lea.vmem %s5, %s169
    %v182 = vld [vmem:[%s181] sm:$0x1]
    %vm183 = vcmask 57344
    %184 = vst.msk [vmem:[#allocation3] sm:$0x1] %vm183, %v182
    %s185 = scalar_lea.vmem %s6, %s169
    %v186 = vld [vmem:[%s185] sm:$0x1]
    %187 = vst.msk [vmem:[#allocation4] sm:$0x1] %vm183, %v186
    %s188 = scalar_lea.vmem %s4, %s170
    %v189 = vld [vmem:[%s188] sm:$0x1]
    %190 = vst.msk [vmem:[#allocation2 + $0x1] sm:$0x1] %vm179, %v189
    %s191 = scalar_lea.vmem %s5, %s170
    %v192 = vld [vmem:[%s191] sm:$0x1]
    %193 = vst.msk [vmem:[#allocation3 + $0x1] sm:$0x1] %vm183, %v192
    %s194 = scalar_lea.vmem %s6, %s170
    %v195 = vld [vmem:[%s194] sm:$0x1]
    %196 = vst.msk [vmem:[#allocation4 + $0x1] sm:$0x1] %vm183, %v195
    %s197 = scalar_lea.vmem %s4, %s171
    %v198 = vld [vmem:[%s197] sm:$0x1]
    %199 = vst.msk [vmem:[#allocation2 + $0x2] sm:$0x1] %vm179, %v198
    %s200 = scalar_lea.vmem %s5, %s171
    %v201 = vld [vmem:[%s200] sm:$0x1]
    %202 = vst.msk [vmem:[#allocation3 + $0x2] sm:$0x1] %vm183, %v201
    %s203 = scalar_lea.vmem %s6, %s171
    %v204 = vld [vmem:[%s203] sm:$0x1]
    %205 = vst.msk [vmem:[#allocation4 + $0x2] sm:$0x1] %vm183, %v204
    %s206 = scalar_lea.vmem %s4, %s172
    %v207 = vld [vmem:[%s206] sm:$0x1]
    %208 = vst.msk [vmem:[#allocation2 + $0x3] sm:$0x1] %vm179, %v207
    %s209 = scalar_lea.vmem %s5, %s172
    %v210 = vld [vmem:[%s209] sm:$0x1]
    %211 = vst.msk [vmem:[#allocation3 + $0x3] sm:$0x1] %vm183, %v210
    %s212 = scalar_lea.vmem %s6, %s172
    %v213 = vld [vmem:[%s212] sm:$0x1]
    %214 = vst.msk [vmem:[#allocation4 + $0x3] sm:$0x1] %vm183, %v213
    %s215 = scalar_lea.vmem %s4, %s173
    %v216 = vld [vmem:[%s215] sm:$0x1]
    %217 = vst.msk [vmem:[#allocation2 + $0x4] sm:$0x1] %vm179, %v216
    %s218 = scalar_lea.vmem %s5, %s173
    %v219 = vld [vmem:[%s218] sm:$0x1]
    %220 = vst.msk [vmem:[#allocation3 + $0x4] sm:$0x1] %vm183, %v219
    %s221 = scalar_lea.vmem %s6, %s173
    %v222 = vld [vmem:[%s221] sm:$0x1]
    %223 = vst.msk [vmem:[#allocation4 + $0x4] sm:$0x1] %vm183, %v222
    %s224 = scalar_lea.vmem %s4, %s174
    %v225 = vld [vmem:[%s224] sm:$0x1]
    %226 = vst.msk [vmem:[#allocation2 + $0x5] sm:$0x1] %vm179, %v225
    %s227 = scalar_lea.vmem %s5, %s174
    %v228 = vld [vmem:[%s227] sm:$0x1]
    %229 = vst.msk [vmem:[#allocation3 + $0x5] sm:$0x1] %vm183, %v228
    %s230 = scalar_lea.vmem %s6, %s174
    %v231 = vld [vmem:[%s230] sm:$0x1]
    %232 = vst.msk [vmem:[#allocation4 + $0x5] sm:$0x1] %vm183, %v231
    %s233 = scalar_lea.vmem %s4, %s175
    %v234 = vld [vmem:[%s233] sm:$0x1]
    %235 = vst.msk [vmem:[#allocation2 + $0x6] sm:$0x1] %vm179, %v234
    %s236 = scalar_lea.vmem %s5, %s175
    %v237 = vld [vmem:[%s236] sm:$0x1]
    %238 = vst.msk [vmem:[#allocation3 + $0x6] sm:$0x1] %vm183, %v237
    %s239 = scalar_lea.vmem %s6, %s175
    %v240 = vld [vmem:[%s239] sm:$0x1]
    %241 = vst.msk [vmem:[#allocation4 + $0x6] sm:$0x1] %vm183, %v240
    %s242 = scalar_lea.vmem %s4, %s176
    %v243 = vld [vmem:[%s242] sm:$0x1]
    %244 = vst.msk [vmem:[#allocation2 + $0x7] sm:$0x1] %vm179, %v243
    %s245 = scalar_lea.vmem %s5, %s176
    %v246 = vld [vmem:[%s245] sm:$0x1]
    %247 = vst.msk [vmem:[#allocation3 + $0x7] sm:$0x1] %vm183, %v246
    %s248 = scalar_lea.vmem %s6, %s176
    %v249 = vld [vmem:[%s248] sm:$0x1]
    %250 = vst.msk [vmem:[#allocation4 + $0x7] sm:$0x1] %vm183, %v249
    %s251 = sld [smem:[#allocation5]]
    %v252 = vld [vmem:[%s2] sm:$0xff]
    %v253 = vld [vmem:[%s3] sm:$0xff]
    %v254 = vld [vmem:[#allocation3] sm:$0xff]
    %v255 = vld [vmem:[#allocation4] sm:$0xff]
    %v256 = vld [vmem:[#allocation2] sm:$0xff]
    %v257 = vsub.f32 1.0, %v253
    %v258 = vmul.f32 %v254, %v257
    %v259 = vmul.f32 %v252, %v253
    %v260 = vadd.f32 %v258, %v259
    %v261 = vsel %vm162, %v252, 0.0
    %v262 = vrot.slane %v261, 4
    %v263 = vadd.f32 %v261, %v262
    %v264 = vrot.slane %v263, 2
    %v265 = vadd.f32 %v263, %v264
    %v266 = vrot.slane %v265, 1
    %v267 = vadd.f32 %v265, %v266
    %v268 = vadd.f32 %v253, 1e-06
    %v269 = vsel %vm162, %v268, 0.0
    %v270 = vrot.slane %v269, 4
    %v271 = vadd.f32 %v269, %v270
    %v272 = vrot.slane %v271, 2
    %v273 = vadd.f32 %v271, %v272
    %v274 = vrot.slane %v273, 1
    %v275 = vadd.f32 %v273, %v274
    %v276 = vrcp.pop %v275
    %v277 = vmul.f32 %v267, %v276
    %v278 = vstv %s251
    %v279 = vsub.f32 %v278, %v255
    %v280 = vmul.f32 %v255, %v257
    %v281 = vmul.f32 %v278, %v253
    %v282 = vadd.f32 %v280, %v281
    %v283 = vpack.c.bf16 %v279, %v279
    %v284 = vld [vmem:[#allocation9] sm:$0xf]
    %v286 = vsel %vm162, %v283, 0
    %vm288 = vcmask 1043456
    %v290 = vsel %vm288, %v284, 0
    %292 = vmatprep.subr.bf16.mxu0 0
    %293 = vmatpush1.bf16.msra.mxu0 %v290
    %294 = vmatprep.subr.bf16.mxu0 0
    %295 = vmatpush1.bf16.msra.mxu0 0
    %296 = vmatprep.subr.bf16.mxu0 0
    %297 = vmatpush1.bf16.msra.mxu0 0
    %298 = vmatprep.subr.bf16.mxu0 0
    %299 = vmatpush1.bf16.msra.mxu0 0
    %300 = vmatprep.subr.bf16.mxu0 0
    %301 = vmatpush1.bf16.msra.mxu0 0
    %302 = vmatprep.subr.bf16.mxu0 0
    %303 = vmatpush1.bf16.msra.mxu0 0
    %304 = vmatprep.subr.bf16.mxu0 0
    %305 = vmatpush1.bf16.msra.mxu0 0
    %306 = vmatprep.subr.bf16.mxu0 0
    %307 = vmatpush1.bf16.msra.mxu0 0
    %308 = vmatprep.subr.bf16.mxu0 0
    %309 = vmatpush1.bf16.msra.mxu0 0
    %310 = vmatprep.subr.bf16.mxu0 0
    %311 = vmatpush1.bf16.msra.mxu0 0
    %312 = vmatprep.subr.bf16.mxu0 0
    %313 = vmatpush1.bf16.msra.mxu0 0
    %314 = vmatprep.subr.bf16.mxu0 0
    %315 = vmatpush1.bf16.msra.mxu0 0
    %316 = vmatprep.subr.bf16.mxu0 0
    %317 = vmatpush1.bf16.msra.mxu0 0
    %318 = vmatprep.subr.bf16.mxu0 0
    %319 = vmatpush1.bf16.msra.mxu0 0
    %320 = vmatprep.subr.bf16.mxu0 0
    %321 = vmatpush1.bf16.msra.mxu0 0
    %322 = vmatprep.subr.bf16.mxu0 0
    %323 = vmatpush1.bf16.msra.mxu0 0
    %324 = vmatprep.mubr.bf16.mxu0 0
    %325 = vmatmul.mubr.bf16.gmra.mrb[0].mxu0 %v286
    %v326 = vpop.f32.mrb[0].mxu0
    %v327 = vadd.f32 0.0, %v326
    %v328 = vpop.f32.mrb[0].mxu0
    %v329 = vpop.f32.mrb[0].mxu0
    %v330 = vpop.f32.mrb[0].mxu0
    %331 = vdwg.mxu0
    %v332 = vmax.f32 %v327, 0.0
    %v333 = vsub.f32 0.0, %v332
    %v334 = vmul.f32 %v333, 1.442695
    %v335 = vpow.pop %v334
    %v336 = vld [vmem:[#allocation10] sm:$0xf]
    %v338 = vsel %vm288, %v336, 0
    %340 = vmatprep.subr.bf16.mxu0 0
    %341 = vmatpush1.bf16.msra.mxu0 %v338
    %342 = vmatprep.subr.bf16.mxu0 0
    %343 = vmatpush1.bf16.msra.mxu0 0
    %344 = vmatprep.subr.bf16.mxu0 0
    %345 = vmatpush1.bf16.msra.mxu0 0
    %346 = vmatprep.subr.bf16.mxu0 0
    %347 = vmatpush1.bf16.msra.mxu0 0
    %348 = vmatprep.subr.bf16.mxu0 0
    %349 = vmatpush1.bf16.msra.mxu0 0
    %350 = vmatprep.subr.bf16.mxu0 0
    %351 = vmatpush1.bf16.msra.mxu0 0
    %352 = vmatprep.subr.bf16.mxu0 0
    %353 = vmatpush1.bf16.msra.mxu0 0
    %354 = vmatprep.subr.bf16.mxu0 0
    %355 = vmatpush1.bf16.msra.mxu0 0
    %356 = vmatprep.subr.bf16.mxu0 0
    %357 = vmatpush1.bf16.msra.mxu0 0
    %358 = vmatprep.subr.bf16.mxu0 0
    %359 = vmatpush1.bf16.msra.mxu0 0
    %360 = vmatprep.subr.bf16.mxu0 0
    %361 = vmatpush1.bf16.msra.mxu0 0
    %362 = vmatprep.subr.bf16.mxu0 0
    %363 = vmatpush1.bf16.msra.mxu0 0
    %364 = vmatprep.subr.bf16.mxu0 0
    %365 = vmatpush1.bf16.msra.mxu0 0
    %366 = vmatprep.subr.bf16.mxu0 0
    %367 = vmatpush1.bf16.msra.mxu0 0
    %368 = vmatprep.subr.bf16.mxu0 0
    %369 = vmatpush1.bf16.msra.mxu0 0
    %370 = vmatprep.subr.bf16.mxu0 0
    %371 = vmatpush1.bf16.msra.mxu0 0
    %372 = vmatprep.mubr.bf16.mxu0 0
    %373 = vmatmul.mubr.bf16.gmra.mrb[0].mxu0 %v286
    %v374 = vpop.f32.mrb[0].mxu0
    %v375 = vadd.f32 0.0, %v374
    %v376 = vpop.f32.mrb[0].mxu0
    %v377 = vpop.f32.mrb[0].mxu0
    %v378 = vpop.f32.mrb[0].mxu0
    %379 = vdwg.mxu0
    %v380 = vmax.f32 %v375, 0.0
    %v381 = vsub.f32 0.0, %v380
    %v382 = vmul.f32 %v381, 1.442695
    %v383 = vpow.pop %v382
    %v384 = vmul.f32 %v335, %v260
    %v385 = vsub.f32 1.0, %v335
    %v386 = vmul.f32 %v385, %v277
    %v387 = vadd.f32 %v384, %v386
    %v388 = vmul.f32 %v257, %v387
    %v389 = vadd.f32 %v259, %v388
    %v390 = vmul.f32 %v383, %v256
    %v391 = vpack.c.bf16 %v389, %v389
    %v392 = vld [vmem:[%s9] sm:$0xf]
    %v393 = vpack.c.bf16 %v390, %v390
    %v394 = vld [vmem:[%s10] sm:$0xf]
    %v395 = vld [vmem:[%s10 + $0x4] sm:$0xf]
    %v396 = vld [vmem:[%s10 + $0x8] sm:$0xf]
    %v397 = vld [vmem:[%s10 + $0xc] sm:$0xf]
    %v402 = vunpack.c.l.b16 %v394
    %v403 = vunpack.c.l.b16 %v395
    %v404 = vunpack.c.l.b16 %v396
    %v405 = vunpack.c.l.b16 %v397
    %v406 = vpack.c.b16 %v403, %v402
    %v407 = vpack.c.b16 %v405, %v404
    %v411 = vsel %vm157, %v393, 0
    %413 = vmatprep.subr.bf16.mxu0 0
    %414 = vmatpush1.bf16.msra.mxu0 %v406
    %415 = vmatprep.subr.bf16.mxu0 0
    %416 = vmatpush1.bf16.msra.mxu0 %v407
    %417 = vmatprep.subr.bf16.mxu0 0
    %418 = vmatpush1.bf16.msra.mxu0 0
    %419 = vmatprep.subr.bf16.mxu0 0
    %420 = vmatpush1.bf16.msra.mxu0 0
    %421 = vmatprep.subr.bf16.mxu0 0
    %422 = vmatpush1.bf16.msra.mxu0 0
    %423 = vmatprep.subr.bf16.mxu0 0
    %424 = vmatpush1.bf16.msra.mxu0 0
    %425 = vmatprep.subr.bf16.mxu0 0
    %426 = vmatpush1.bf16.msra.mxu0 0
    %427 = vmatprep.subr.bf16.mxu0 0
    %428 = vmatpush1.bf16.msra.mxu0 0
    %429 = vmatprep.subr.bf16.mxu0 0
    %430 = vmatpush1.bf16.msra.mxu0 0
    %431 = vmatprep.subr.bf16.mxu0 0
    %432 = vmatpush1.bf16.msra.mxu0 0
    %433 = vmatprep.subr.bf16.mxu0 0
    %434 = vmatpush1.bf16.msra.mxu0 0
    %435 = vmatprep.subr.bf16.mxu0 0
    %436 = vmatpush1.bf16.msra.mxu0 0
    %437 = vmatprep.subr.bf16.mxu0 0
    %438 = vmatpush1.bf16.msra.mxu0 0
    %439 = vmatprep.subr.bf16.mxu0 0
    %440 = vmatpush1.bf16.msra.mxu0 0
    %441 = vmatprep.subr.bf16.mxu0 0
    %442 = vmatpush1.bf16.msra.mxu0 0
    %443 = vmatprep.subr.bf16.mxu0 0
    %444 = vmatpush1.bf16.msra.mxu0 0
    %445 = vmatprep.mubr.bf16.mxu0 0
    %446 = vmatmul.mubr.bf16.gmra.mrb[0].mxu0 %v411
    %v447 = vpop.f32.mrb[0].mxu0
    %v448 = vadd.f32 0.0, %v447
    %v449 = vpop.f32.mrb[0].mxu0
    %v450 = vpop.f32.mrb[0].mxu0
    %v451 = vpop.f32.mrb[0].mxu0
    %452 = vdwg.mxu0
    %v454 = vsel %vm162, %v391, 0
    %v457 = vsel %vm288, %v392, 0
    %459 = vmatprep.subr.bf16.mxu0 0
    %460 = vmatpush1.bf16.msra.mxu0 %v457
    %461 = vmatprep.subr.bf16.mxu0 0
    %462 = vmatpush1.bf16.msra.mxu0 0
    %463 = vmatprep.subr.bf16.mxu0 0
    %464 = vmatpush1.bf16.msra.mxu0 0
    %465 = vmatprep.subr.bf16.mxu0 0
    %466 = vmatpush1.bf16.msra.mxu0 0
    %467 = vmatprep.subr.bf16.mxu0 0
    %468 = vmatpush1.bf16.msra.mxu0 0
    %469 = vmatprep.subr.bf16.mxu0 0
    %470 = vmatpush1.bf16.msra.mxu0 0
    %471 = vmatprep.subr.bf16.mxu0 0
    %472 = vmatpush1.bf16.msra.mxu0 0
    %473 = vmatprep.subr.bf16.mxu0 0
    %474 = vmatpush1.bf16.msra.mxu0 0
    %475 = vmatprep.subr.bf16.mxu0 0
    %476 = vmatpush1.bf16.msra.mxu0 0
    %477 = vmatprep.subr.bf16.mxu0 0
    %478 = vmatpush1.bf16.msra.mxu0 0
    %479 = vmatprep.subr.bf16.mxu0 0
    %480 = vmatpush1.bf16.msra.mxu0 0
    %481 = vmatprep.subr.bf16.mxu0 0
    %482 = vmatpush1.bf16.msra.mxu0 0
    %483 = vmatprep.subr.bf16.mxu0 0
    %484 = vmatpush1.bf16.msra.mxu0 0
    %485 = vmatprep.subr.bf16.mxu0 0
    %486 = vmatpush1.bf16.msra.mxu0 0
    %487 = vmatprep.subr.bf16.mxu0 0
    %488 = vmatpush1.bf16.msra.mxu0 0
    %489 = vmatprep.subr.bf16.mxu0 0
    %490 = vmatpush1.bf16.msra.mxu0 0
    %491 = vmatprep.mubr.bf16.mxu0 0
    %492 = vmatmul.mubr.bf16.gmra.mrb[0].mxu0 %v454
    %v493 = vpop.f32.mrb[0].mxu0
    %v494 = vadd.f32 %v448, %v493
    %v495 = vpop.f32.mrb[0].mxu0
    %v496 = vpop.f32.mrb[0].mxu0
    %v497 = vpop.f32.mrb[0].mxu0
    %498 = vdwg.mxu0
    %v499 = vpack.c.bf16 %v253, %v253
    %v500 = vld [vmem:[#allocation12] sm:$0xf]
    %v502 = vsel %vm162, %v499, 0
    %v505 = vsel %vm288, %v500, 0
    %507 = vmatprep.subr.bf16.mxu0 0
    %508 = vmatpush1.bf16.msra.mxu0 %v505
    %509 = vmatprep.subr.bf16.mxu0 0
    %510 = vmatpush1.bf16.msra.mxu0 0
    %511 = vmatprep.subr.bf16.mxu0 0
    %512 = vmatpush1.bf16.msra.mxu0 0
    %513 = vmatprep.subr.bf16.mxu0 0
    %514 = vmatpush1.bf16.msra.mxu0 0
    %515 = vmatprep.subr.bf16.mxu0 0
    %516 = vmatpush1.bf16.msra.mxu0 0
    %517 = vmatprep.subr.bf16.mxu0 0
    %518 = vmatpush1.bf16.msra.mxu0 0
    %519 = vmatprep.subr.bf16.mxu0 0
    %520 = vmatpush1.bf16.msra.mxu0 0
    %521 = vmatprep.subr.bf16.mxu0 0
    %522 = vmatpush1.bf16.msra.mxu0 0
    %523 = vmatprep.subr.bf16.mxu0 0
    %524 = vmatpush1.bf16.msra.mxu0 0
    %525 = vmatprep.subr.bf16.mxu0 0
    %526 = vmatpush1.bf16.msra.mxu0 0
    %527 = vmatprep.subr.bf16.mxu0 0
    %528 = vmatpush1.bf16.msra.mxu0 0
    %529 = vmatprep.subr.bf16.mxu0 0
    %530 = vmatpush1.bf16.msra.mxu0 0
    %531 = vmatprep.subr.bf16.mxu0 0
    %532 = vmatpush1.bf16.msra.mxu0 0
    %533 = vmatprep.subr.bf16.mxu0 0
    %534 = vmatpush1.bf16.msra.mxu0 0
    %535 = vmatprep.subr.bf16.mxu0 0
    %536 = vmatpush1.bf16.msra.mxu0 0
    %537 = vmatprep.subr.bf16.mxu0 0
    %538 = vmatpush1.bf16.msra.mxu0 0
    %539 = vmatprep.mubr.bf16.mxu0 0
    %540 = vmatmul.mubr.bf16.gmra.mrb[0].mxu0 %v502
    %v541 = vpop.f32.mrb[0].mxu0
    %v542 = vadd.f32 0.0, %v541
    %v543 = vpop.f32.mrb[0].mxu0
    %v544 = vpop.f32.mrb[0].mxu0
    %v545 = vpop.f32.mrb[0].mxu0
    %546 = vdwg.mxu0
    %v547 = vadd.f32 %v494, %v542
    %v548 = vld [vmem:[#allocation13] sm:$0x1]
    %v550 = vlaneseq
    %v551 = vshrl.u32 %v550, 7
    %v552 = vsub.s32 0, %v551
    %v553 = vrot.slane %v548, %v552
    %v555 = vadd.f32 %v547, %v553
    %v556 = vxor.u32 %v555, 2147483648
    %v557 = vmul.f32 %v556, 1.442695
    %v558 = vpow.pop %v557
    %v559 = vadd.f32 %v558, 1.0
    %v560 = vrcp.pop %v559
    %v561 = vmul.f32 1.0, %v560
    %v562 = vld [vmem:[#allocation15] sm:$0xf]
    %v563 = vld [vmem:[#allocation16] sm:$0xf]
    %v565 = vsel %vm288, %v563, 0
    %567 = vmatprep.subr.bf16.mxu0 0
    %568 = vmatpush1.bf16.msra.mxu0 %v565
    %569 = vmatprep.subr.bf16.mxu0 0
    %570 = vmatpush1.bf16.msra.mxu0 0
    %571 = vmatprep.subr.bf16.mxu0 0
    %572 = vmatpush1.bf16.msra.mxu0 0
    %573 = vmatprep.subr.bf16.mxu0 0
    %574 = vmatpush1.bf16.msra.mxu0 0
    %575 = vmatprep.subr.bf16.mxu0 0
    %576 = vmatpush1.bf16.msra.mxu0 0
    %577 = vmatprep.subr.bf16.mxu0 0
    %578 = vmatpush1.bf16.msra.mxu0 0
    %579 = vmatprep.subr.bf16.mxu0 0
    %580 = vmatpush1.bf16.msra.mxu0 0
    %581 = vmatprep.subr.bf16.mxu0 0
    %582 = vmatpush1.bf16.msra.mxu0 0
    %583 = vmatprep.subr.bf16.mxu0 0
    %584 = vmatpush1.bf16.msra.mxu0 0
    %585 = vmatprep.subr.bf16.mxu0 0
    %586 = vmatpush1.bf16.msra.mxu0 0
    %587 = vmatprep.subr.bf16.mxu0 0
    %588 = vmatpush1.bf16.msra.mxu0 0
    %589 = vmatprep.subr.bf16.mxu0 0
    %590 = vmatpush1.bf16.msra.mxu0 0
    %591 = vmatprep.subr.bf16.mxu0 0
    %592 = vmatpush1.bf16.msra.mxu0 0
    %593 = vmatprep.subr.bf16.mxu0 0
    %594 = vmatpush1.bf16.msra.mxu0 0
    %595 = vmatprep.subr.bf16.mxu0 0
    %596 = vmatpush1.bf16.msra.mxu0 0
    %597 = vmatprep.subr.bf16.mxu0 0
    %598 = vmatpush1.bf16.msra.mxu0 0
    %599 = vmatprep.mubr.bf16.mxu0 0
    %600 = vmatmul.mubr.bf16.gmra.mrb[0].mxu0 %v502
    %v601 = vpop.f32.mrb[0].mxu0
    %v602 = vadd.f32 0.0, %v601
    %v603 = vpop.f32.mrb[0].mxu0
    %v604 = vpop.f32.mrb[0].mxu0
    %v605 = vpop.f32.mrb[0].mxu0
    %606 = vdwg.mxu0
    %v608 = vsel %vm288, %v562, 0
    %610 = vmatprep.subr.bf16.mxu0 0
    %611 = vmatpush1.bf16.msra.mxu0 %v608
    %612 = vmatprep.subr.bf16.mxu0 0
    %613 = vmatpush1.bf16.msra.mxu0 0
    %614 = vmatprep.subr.bf16.mxu0 0
    %615 = vmatpush1.bf16.msra.mxu0 0
    %616 = vmatprep.subr.bf16.mxu0 0
    %617 = vmatpush1.bf16.msra.mxu0 0
    %618 = vmatprep.subr.bf16.mxu0 0
    %619 = vmatpush1.bf16.msra.mxu0 0
    %620 = vmatprep.subr.bf16.mxu0 0
    %621 = vmatpush1.bf16.msra.mxu0 0
    %622 = vmatprep.subr.bf16.mxu0 0
    %623 = vmatpush1.bf16.msra.mxu0 0
    %624 = vmatprep.subr.bf16.mxu0 0
    %625 = vmatpush1.bf16.msra.mxu0 0
    %626 = vmatprep.subr.bf16.mxu0 0
    %627 = vmatpush1.bf16.msra.mxu0 0
    %628 = vmatprep.subr.bf16.mxu0 0
    %629 = vmatpush1.bf16.msra.mxu0 0
    %630 = vmatprep.subr.bf16.mxu0 0
    %631 = vmatpush1.bf16.msra.mxu0 0
    %632 = vmatprep.subr.bf16.mxu0 0
    %633 = vmatpush1.bf16.msra.mxu0 0
    %634 = vmatprep.subr.bf16.mxu0 0
    %635 = vmatpush1.bf16.msra.mxu0 0
    %636 = vmatprep.subr.bf16.mxu0 0
    %637 = vmatpush1.bf16.msra.mxu0 0
    %638 = vmatprep.subr.bf16.mxu0 0
    %639 = vmatpush1.bf16.msra.mxu0 0
    %640 = vmatprep.subr.bf16.mxu0 0
    %641 = vmatpush1.bf16.msra.mxu0 0
    %642 = vmatprep.mubr.bf16.mxu0 0
    %643 = vmatmul.mubr.bf16.gmra.mrb[0].mxu0 %v454
    %v644 = vpop.f32.mrb[0].mxu0
    %v645 = vadd.f32 %v602, %v644
    %v646 = vpop.f32.mrb[0].mxu0
    %v647 = vpop.f32.mrb[0].mxu0
    %v648 = vpop.f32.mrb[0].mxu0
    %649 = vdwg.mxu0
    %651 = vrot.lane.b32.xlu0 %v390, 32
    %v652 = vpop.permute.xlu0 %651
    %v654 = vmul.f32 %v561, %v652
    %v655 = vpack.c.bf16 %v654, %v654
    %v656 = vld [vmem:[%s15] sm:$0xf]
    %v657 = vld [vmem:[%s15 + $0x4] sm:$0xf]
    %v658 = vld [vmem:[%s15 + $0x8] sm:$0xf]
    %v659 = vld [vmem:[%s15 + $0xc] sm:$0xf]
    %661 = vrot.lane.b32.xlu0 %v655, 96
    %v662 = vpop.permute.xlu0 %661
    %v667 = vunpack.c.l.b16 %v656
    %v668 = vunpack.c.l.b16 %v657
    %v669 = vunpack.c.l.b16 %v658
    %v670 = vunpack.c.l.b16 %v659
    %v671 = vpack.c.b16 %v668, %v667
    %v672 = vpack.c.b16 %v670, %v669
    %v676 = vsel %vm157, %v662, 0
    %678 = vmatprep.subr.bf16.mxu0 0
    %679 = vmatpush1.bf16.msra.mxu0 %v671
    %680 = vmatprep.subr.bf16.mxu0 0
    %681 = vmatpush1.bf16.msra.mxu0 %v672
    %682 = vmatprep.subr.bf16.mxu0 0
    %683 = vmatpush1.bf16.msra.mxu0 0
    %684 = vmatprep.subr.bf16.mxu0 0
    %685 = vmatpush1.bf16.msra.mxu0 0
    %686 = vmatprep.subr.bf16.mxu0 0
    %687 = vmatpush1.bf16.msra.mxu0 0
    %688 = vmatprep.subr.bf16.mxu0 0
    %689 = vmatpush1.bf16.msra.mxu0 0
    %690 = vmatprep.subr.bf16.mxu0 0
    %691 = vmatpush1.bf16.msra.mxu0 0
    %692 = vmatprep.subr.bf16.mxu0 0
    %693 = vmatpush1.bf16.msra.mxu0 0
    %694 = vmatprep.subr.bf16.mxu0 0
    %695 = vmatpush1.bf16.msra.mxu0 0
    %696 = vmatprep.subr.bf16.mxu0 0
    %697 = vmatpush1.bf16.msra.mxu0 0
    %698 = vmatprep.subr.bf16.mxu0 0
    %699 = vmatpush1.bf16.msra.mxu0 0
    %700 = vmatprep.subr.bf16.mxu0 0
    %701 = vmatpush1.bf16.msra.mxu0 0
    %702 = vmatprep.subr.bf16.mxu0 0
    %703 = vmatpush1.bf16.msra.mxu0 0
    %704 = vmatprep.subr.bf16.mxu0 0
    %705 = vmatpush1.bf16.msra.mxu0 0
    %706 = vmatprep.subr.bf16.mxu0 0
    %707 = vmatpush1.bf16.msra.mxu0 0
    %708 = vmatprep.subr.bf16.mxu0 0
    %709 = vmatpush1.bf16.msra.mxu0 0
    %710 = vmatprep.mubr.bf16.mxu0 0
    %711 = vmatmul.mubr.bf16.gmra.mrb[0].mxu0 %v676
    %v712 = vpop.f32.mrb[0].mxu0
    %v713 = vadd.f32 0.0, %v712
    %v714 = vpop.f32.mrb[0].mxu0
    %v715 = vpop.f32.mrb[0].mxu0
    %v716 = vpop.f32.mrb[0].mxu0
    %717 = vdwg.mxu0
    %v718 = vadd.f32 %v645, %v713
    %v719 = vld [vmem:[#allocation18] sm:$0x1]
    %v721 = vlaneseq
    %v722 = vshrl.u32 %v721, 7
    %v723 = vsub.s32 0, %v722
    %v724 = vrot.slane %v719, %v723
    %v726 = vadd.f32 %v718, %v724
    %v727 = vtanh.pop %v726
    %v728 = vsub.f32 1.0, %v561
    %v729 = vmul.f32 %v728, %v390
    %v730 = vmul.f32 %v561, %v727
    %v731 = vadd.f32 %v729, %v730
    %732 = vst.msk [vmem:[#allocation2] sm:$0xff] %vm157, %v731
    %733 = vst.msk [vmem:[#allocation3] sm:$0xff] %vm162, %v260
    %734 = vst.msk [vmem:[#allocation4] sm:$0xff] %vm162, %v282
    %v735 = vld [vmem:[#allocation2] sm:$0x1]
    %s736 = scalar_lea.vmem %s17, %s169
    %737 = vst.msk [vmem:[%s736] sm:$0x1] %vm179, %v735
    %v738 = vld [vmem:[#allocation3] sm:$0x1]
    %s739 = scalar_lea.vmem %s18, %s169
    %740 = vst.msk [vmem:[%s739] sm:$0x1] %vm183, %v738
    %v741 = vld [vmem:[#allocation4] sm:$0x1]
    %s742 = scalar_lea.vmem %s19, %s169
    %743 = vst.msk [vmem:[%s742] sm:$0x1] %vm183, %v741
    %v744 = vld [vmem:[#allocation2 + $0x1] sm:$0x1]
    %s745 = scalar_lea.vmem %s17, %s170
    %746 = vst.msk [vmem:[%s745] sm:$0x1] %vm179, %v744
    %v747 = vld [vmem:[#allocation3 + $0x1] sm:$0x1]
    %s748 = scalar_lea.vmem %s18, %s170
    %749 = vst.msk [vmem:[%s748] sm:$0x1] %vm183, %v747
    %v750 = vld [vmem:[#allocation4 + $0x1] sm:$0x1]
    %s751 = scalar_lea.vmem %s19, %s170
    %752 = vst.msk [vmem:[%s751] sm:$0x1] %vm183, %v750
    %v753 = vld [vmem:[#allocation2 + $0x2] sm:$0x1]
    %s754 = scalar_lea.vmem %s17, %s171
    %755 = vst.msk [vmem:[%s754] sm:$0x1] %vm179, %v753
    %v756 = vld [vmem:[#allocation3 + $0x2] sm:$0x1]
    %s757 = scalar_lea.vmem %s18, %s171
    %758 = vst.msk [vmem:[%s757] sm:$0x1] %vm183, %v756
    %v759 = vld [vmem:[#allocation4 + $0x2] sm:$0x1]
    %s760 = scalar_lea.vmem %s19, %s171
    %761 = vst.msk [vmem:[%s760] sm:$0x1] %vm183, %v759
    %v762 = vld [vmem:[#allocation2 + $0x3] sm:$0x1]
    %s763 = scalar_lea.vmem %s17, %s172
    %764 = vst.msk [vmem:[%s763] sm:$0x1] %vm179, %v762
    %v765 = vld [vmem:[#allocation3 + $0x3] sm:$0x1]
    %s766 = scalar_lea.vmem %s18, %s172
    %767 = vst.msk [vmem:[%s766] sm:$0x1] %vm183, %v765
    %v768 = vld [vmem:[#allocation4 + $0x3] sm:$0x1]
    %s769 = scalar_lea.vmem %s19, %s172
    %770 = vst.msk [vmem:[%s769] sm:$0x1] %vm183, %v768
    %v771 = vld [vmem:[#allocation2 + $0x4] sm:$0x1]
    %s772 = scalar_lea.vmem %s17, %s173
    %773 = vst.msk [vmem:[%s772] sm:$0x1] %vm179, %v771
    %v774 = vld [vmem:[#allocation3 + $0x4] sm:$0x1]
    %s775 = scalar_lea.vmem %s18, %s173
    %776 = vst.msk [vmem:[%s775] sm:$0x1] %vm183, %v774
    %v777 = vld [vmem:[#allocation4 + $0x4] sm:$0x1]
    %s778 = scalar_lea.vmem %s19, %s173
    %779 = vst.msk [vmem:[%s778] sm:$0x1] %vm183, %v777
    %v780 = vld [vmem:[#allocation2 + $0x5] sm:$0x1]
    %s781 = scalar_lea.vmem %s17, %s174
    %782 = vst.msk [vmem:[%s781] sm:$0x1] %vm179, %v780
    %v783 = vld [vmem:[#allocation3 + $0x5] sm:$0x1]
    %s784 = scalar_lea.vmem %s18, %s174
    %785 = vst.msk [vmem:[%s784] sm:$0x1] %vm183, %v783
    %v786 = vld [vmem:[#allocation4 + $0x5] sm:$0x1]
    %s787 = scalar_lea.vmem %s19, %s174
    %788 = vst.msk [vmem:[%s787] sm:$0x1] %vm183, %v786
    %v789 = vld [vmem:[#allocation2 + $0x6] sm:$0x1]
    %s790 = scalar_lea.vmem %s17, %s175
    %791 = vst.msk [vmem:[%s790] sm:$0x1] %vm179, %v789
    %v792 = vld [vmem:[#allocation3 + $0x6] sm:$0x1]
    %s793 = scalar_lea.vmem %s18, %s175
    %794 = vst.msk [vmem:[%s793] sm:$0x1] %vm183, %v792
    %v795 = vld [vmem:[#allocation4 + $0x6] sm:$0x1]
    %s796 = scalar_lea.vmem %s19, %s175
    %797 = vst.msk [vmem:[%s796] sm:$0x1] %vm183, %v795
    %v798 = vld [vmem:[#allocation2 + $0x7] sm:$0x1]
    %s799 = scalar_lea.vmem %s17, %s176
    %800 = vst.msk [vmem:[%s799] sm:$0x1] %vm179, %v798
    %v801 = vld [vmem:[#allocation3 + $0x7] sm:$0x1]
    %s802 = scalar_lea.vmem %s18, %s176
    %803 = vst.msk [vmem:[%s802] sm:$0x1] %vm183, %v801
    %v804 = vld [vmem:[#allocation4 + $0x7] sm:$0x1]
    %s805 = scalar_lea.vmem %s19, %s176
    %806 = vst.msk [vmem:[%s805] sm:$0x1] %vm183, %v804
    // Predicated region
    $region102: #{mgn_gru_d_forward.1} parent=1 // pred_check
      _
    $region103: #{mgn_gru_d_forward.1} parent=1 // pred_check_branch
      %808 = sbr.rel (0) target = $region105
    $region104: #{mgn_gru_d_forward.1} parent=1 // pred_region
      _
    $region105: #{mgn_gru_d_forward.1} parent=1 // pred_fallthru
      _
    // Predicated region
    $region106: #{mgn_gru_d_forward.1} parent=1 // pred_check
      _
    $region107: #{mgn_gru_d_forward.1} parent=1 // pred_check_branch
      %810 = sbr.rel (0) target = $region109
    $region108: #{mgn_gru_d_forward.1} parent=1 // pred_region
      _
    $region109: #{mgn_gru_d_forward.1} parent=1 // pred_fallthru
      _
    // Predicated region
    $region110: #{mgn_gru_d_forward.1} parent=1 // pred_check
      _
    $region111: #{mgn_gru_d_forward.1} parent=1 // pred_check_branch
      %812 = sbr.rel (0) target = $region113
    $region112: #{mgn_gru_d_forward.1} parent=1 // pred_region
      _
    $region113: #{mgn_gru_d_forward.1} parent=1 // pred_fallthru
      _
    // Predicated region
    $region114: #{mgn_gru_d_forward.1} parent=1 // pred_check
      _
    $region115: #{mgn_gru_d_forward.1} parent=1 // pred_check_branch
      %814 = sbr.rel (0) target = $region117
    $region116: #{mgn_gru_d_forward.1} parent=1 // pred_region
      _
    $region117: #{mgn_gru_d_forward.1} parent=1 // pred_fallthru
      _
    // Predicated region
    $region118: #{mgn_gru_d_forward.1} parent=1 // pred_check
      _
    $region119: #{mgn_gru_d_forward.1} parent=1 // pred_check_branch
      %816 = sbr.rel (0) target = $region121
    $region120: #{mgn_gru_d_forward.1} parent=1 // pred_region
      _
    $region121: #{mgn_gru_d_forward.1} parent=1 // pred_fallthru
      _
    // Predicated region
    $region122: #{mgn_gru_d_forward.1} parent=1 // pred_check
      _
    $region123: #{mgn_gru_d_forward.1} parent=1 // pred_check_branch
      %818 = sbr.rel (0) target = $region125
    $region124: #{mgn_gru_d_forward.1} parent=1 // pred_region
      _
    $region125: #{mgn_gru_d_forward.1} parent=1 // pred_fallthru
      _
    %819 = vsyncpa [#allocation7], 1
    %820 = vsyncpa [#allocation11], 1
    %821 = vsyncpa [#allocation14], 1
    %822 = vsyncpa [#allocation17], 1
    %823 = vsyncpa [#allocation8], 1

</llo_original>
